<compile_context>
chip_gen: v5e
topology: v5e:2x2
jax: 0.10.0
libtpu: 0.0.40
codegen_flags: <defaults>
</compile_context>

<pallas_src>
import functools

import numpy as np

import jax
import jax.numpy as jnp
from jax.experimental import pallas as pl
from jax.experimental.pallas import tpu as pltpu

# FastKAN defaults (fixed, non-trainable RBF grid).
GRID_MIN, GRID_MAX, NUM_GRIDS = -2.0, 2.0, 8
DENOM = (GRID_MAX - GRID_MIN) / (NUM_GRIDS - 1)
GRID_VALS = tuple(GRID_MIN + i * DENOM for i in range(NUM_GRIDS))
INV_DENOM = 1.0 / DENOM
BN_EPS = 1e-5


# ----------------------------------------------------------------------------- kernel
def _fastkan_layer(feat, w2d, bias, masks, epad_ref, im_ref, *, wp):
    """One FastKAN 3x3 conv (+ folded BN) + ReLU on a (C, Np) feature slab."""
    C, Np = feat.shape
    cexp = (NUM_GRIDS + 1) * C          # expanded channels: [SiLU | RBF_0 .. RBF_7]
    pad = wp + 1

    # --- expanded FastKAN features, written into a lane-axis zero-padded buffer ---
    epad_ref[...] = jnp.zeros_like(epad_ref)
    epad_ref[0:C, pad:pad + Np] = feat * jax.nn.sigmoid(feat)          # base path: SiLU
    for g in range(NUM_GRIDS):                                         # spline path: RBF
        z = (feat - GRID_VALS[g]) * INV_DENOM
        epad_ref[(g + 1) * C:(g + 2) * C, pad:pad + Np] = jnp.exp(-(z * z))

    # --- im2col slab: 9 shifted + edge-masked copies stacked along sublanes ---
    t = 0
    for dy in (-1, 0, 1):
        for dx in (-1, 0, 1):
            off = dy * wp + dx
            shifted = epad_ref[:, pad + off:pad + off + Np]            # (cexp, Np)
            im_ref[t * cexp:(t + 1) * cexp, :] = shifted * masks[t:t + 1, :]
            t += 1

    # --- single fused GEMM over K = 9*(G+1)*C, folded-BN bias, ReLU ---
    acc = jnp.dot(w2d, im_ref[...], preferred_element_type=jnp.float32)
    return jnp.maximum(acc + bias, 0.0)


def _down_kernel(xq_ref, masks_ref, w1_ref, b1_ref, w2_ref, b2_ref, o_ref,
                 epad1_ref, im1_ref, epad2_ref, im2_ref, *, wp):
    masks = masks_ref[...]                                   # (9, Np) edge masks

    # MaxPool2d(2): elementwise max over the 4 pre-split 2x2 quad slots.
    pooled = jnp.max(xq_ref[...], axis=0)                    # (Cin, Np)

    h1 = _fastkan_layer(pooled, w1_ref[...], b1_ref[...], masks,
                        epad1_ref, im1_ref, wp=wp)           # (Cmid, Np)
    h2 = _fastkan_layer(h1, w2_ref[...], b2_ref[...], masks,
                        epad2_ref, im2_ref, wp=wp)           # (Cout, Np)
    o_ref[...] = h2.astype(o_ref.dtype)


# ----------------------------------------------------------------------------- wrapper
def _conv_masks(hp, wp):
    """(9, hp*wp) f32 validity masks for the 9 taps of a 3x3 'SAME' conv."""
    p = np.arange(hp * wp)
    y, x = p // wp, p % wp
    rows = []
    for dy in (-1, 0, 1):
        for dx in (-1, 0, 1):
            rows.append((y + dy >= 0) & (y + dy < hp) & (x + dx >= 0) & (x + dx < wp))
    return jnp.asarray(np.stack(rows).astype(np.float32))


def _pack_layer(wb, bb, ws, gamma, beta, mean, var, eps=BN_EPS):
    """Pack base conv, spline conv and inference BatchNorm into one GEMM weight.

    Column order k = t*(G+1)*C + block*C + c with t = ky*3+kx, block 0 = base
    (SiLU) path, block g+1 = RBF grid g  -- must match the kernel's im2col slab.
    """
    O, C = wb.shape[0], wb.shape[1]
    G = ws.shape[1]
    s = gamma / jnp.sqrt(var + eps)                                     # (O,)
    blocks = jnp.concatenate([wb[:, None], ws], axis=1)                 # (O, G+1, C, 3, 3)
    w2d = jnp.transpose(blocks, (0, 3, 4, 1, 2)).reshape(O, 9 * (G + 1) * C)
    w2d = (w2d * s[:, None]).astype(jnp.float32)
    bias = (s * bb + beta - s * mean).reshape(O, 1).astype(jnp.float32)
    return w2d, bias


def down(x, params):
    """KAN-UNet Down: (B, Cin, H, W) -> (B, Cout, H//2, W//2)."""
    B, Cin, H, W = x.shape
    assert H % 2 == 0 and W % 2 == 0, "MaxPool2d(2) expects even H, W"
    Hp, Wp = H // 2, W // 2
    Np = Hp * Wp
    Cmid = params["wb1"].shape[0]
    Cout = params["wb2"].shape[0]
    assert params["ws1"].shape[1] == NUM_GRIDS
    Cexp1 = (NUM_GRIDS + 1) * Cin
    Cexp2 = (NUM_GRIDS + 1) * Cmid
    PAD = Wp + 1

    # MaxPool quad split: (B, 4, Cin, Hp*Wp) with pooled pixels on the lane axis.
    xq = jnp.transpose(x.reshape(B, Cin, Hp, 2, Wp, 2), (0, 3, 5, 1, 2, 4))
    xq = xq.reshape(B, 4, Cin, Np).astype(jnp.float32)

    masks = _conv_masks(Hp, Wp)
    w1, b1 = _pack_layer(params["wb1"], params["bb1"], params["ws1"],
                         params["g1"], params["be1"], params["m1"], params["v1"])
    w2, b2 = _pack_layer(params["wb2"], params["bb2"], params["ws2"],
                         params["g2"], params["be2"], params["m2"], params["v2"])

    kernel = functools.partial(_down_kernel, wp=Wp)
    out = pl.pallas_call(
        kernel,
        out_shape=jax.ShapeDtypeStruct((B, Cout, Np), jnp.float32),
        grid_spec=pltpu.PrefetchScalarGridSpec(
            num_scalar_prefetch=0,
            grid=(B,),
            in_specs=[
                pl.BlockSpec((None, 4, Cin, Np), lambda i: (i, 0, 0, 0)),
                pl.BlockSpec((9, Np), lambda i: (0, 0)),
                pl.BlockSpec((Cmid, 9 * Cexp1), lambda i: (0, 0)),
                pl.BlockSpec((Cmid, 1), lambda i: (0, 0)),
                pl.BlockSpec((Cout, 9 * Cexp2), lambda i: (0, 0)),
                pl.BlockSpec((Cout, 1), lambda i: (0, 0)),
            ],
            out_specs=pl.BlockSpec((None, Cout, Np), lambda i: (i, 0, 0)),
            scratch_shapes=[
                pltpu.VMEM((Cexp1, Np + 2 * PAD), jnp.float32),   # padded expanded feats, layer 1
                pltpu.VMEM((9 * Cexp1, Np), jnp.float32),         # im2col slab, layer 1
                pltpu.VMEM((Cexp2, Np + 2 * PAD), jnp.float32),   # padded expanded feats, layer 2
                pltpu.VMEM((9 * Cexp2, Np), jnp.float32),         # im2col slab, layer 2
            ],
        ),
        compiler_params=pltpu.CompilerParams(dimension_semantics=("parallel",)),
    )(xq, masks, w1, b1, w2, b2)

    return out.reshape(B, Cout, Hp, Wp)


# ----------------------------------------------------------------------------- reference
def _ref_fastkan_conv(x, wb, bb, ws):
    dn = ("NCHW", "OIHW", "NCHW")
    hp = jax.lax.Precision.HIGHEST
    base = jax.lax.conv_general_dilated(jax.nn.silu(x), wb, (1, 1), "SAME",
                                        dimension_numbers=dn, precision=hp)
    grid = jnp.asarray(GRID_VALS, x.dtype)
    basis = jnp.exp(-(((x[:, None] - grid[None, :, None, None, None]) * INV_DENOM) ** 2))
    B, G, C, H, W = basis.shape
    spline = jax.lax.conv_general_dilated(
        basis.reshape(B, G * C, H, W), ws.reshape(ws.shape[0], G * C, 3, 3),
        (1, 1), "SAME", dimension_numbers=dn, precision=hp)
    return base + spline + bb[None, :, None, None]


def _ref_bn_relu(x, gamma, beta, mean, var, eps=BN_EPS):
    s = gamma / jnp.sqrt(var + eps)
    return jnp.maximum(x * s[None, :, None, None]
                       + (beta - mean * s)[None, :, None, None], 0.0)


def ref_down(x, p):
    B, C, H, W = x.shape
    xp = x.reshape(B, C, H // 2, 2, W // 2, 2).max(axis=(3, 5))
    h = _ref_fastkan_conv(xp, p["wb1"], p["bb1"], p["ws1"])
    h = _ref_bn_relu(h, p["g1"], p["be1"], p["m1"], p["v1"])
    h = _ref_fastkan_conv(h, p["wb2"], p["bb2"], p["ws2"])
    h = _ref_bn_relu(h, p["g2"], p["be2"], p["m2"], p["v2"])
    return h


# ----------------------------------------------------------------------------- main
if __name__ == "__main__":
    B, Cin, Cout, H, W = 2, 4, 8, 16, 16
    Cmid = Cout // 2

    key = jax.random.PRNGKey(0)
    ks = jax.random.split(key, 16)

    x = jax.random.normal(ks[0], (B, Cin, H, W), dtype=jnp.float32)
    params = dict(
        # layer 1: FastKANConvLayer(Cin, Cmid, k=3, pad=1) + BatchNorm2d(Cmid)
        wb1=jax.random.normal(ks[1], (Cmid, Cin, 3, 3), jnp.float32) * 0.3,
        bb1=jax.random.normal(ks[2], (Cmid,), jnp.float32) * 0.1,
        ws1=jax.random.normal(ks[3], (Cmid, NUM_GRIDS, Cin, 3, 3), jnp.float32) * 0.1,
        g1=1.0 + 0.1 * jax.random.normal(ks[4], (Cmid,), jnp.float32),
        be1=0.1 * jax.random.normal(ks[5], (Cmid,), jnp.float32),
        m1=0.1 * jax.random.normal(ks[6], (Cmid,), jnp.float32),
        v1=1.0 + 0.1 * jax.random.uniform(ks[7], (Cmid,), jnp.float32),
        # layer 2: FastKANConvLayer(Cmid, Cout, k=3, pad=1) + BatchNorm2d(Cout)
        wb2=jax.random.normal(ks[8], (Cout, Cmid, 3, 3), jnp.float32) * 0.3,
        bb2=jax.random.normal(ks[9], (Cout,), jnp.float32) * 0.1,
        ws2=jax.random.normal(ks[10], (Cout, NUM_GRIDS, Cmid, 3, 3), jnp.float32) * 0.1,
        g2=1.0 + 0.1 * jax.random.normal(ks[11], (Cout,), jnp.float32),
        be2=0.1 * jax.random.normal(ks[12], (Cout,), jnp.float32),
        m2=0.1 * jax.random.normal(ks[13], (Cout,), jnp.float32),
        v2=1.0 + 0.1 * jax.random.uniform(ks[14], (Cout,), jnp.float32),
    )

    out = jax.block_until_ready(down(x, params))
    ref = jax.block_until_ready(ref_down(x, params))

    assert out.shape == (B, Cout, H // 2, W // 2)
    assert jnp.allclose(out, ref, atol=1e-3, rtol=1e-3), (
        "mismatch vs JAX reference, max abs err = "
        + str(float(jnp.max(jnp.abs(out - ref)))))

    print("KERNEL_OK")
</pallas_src>

<mosaic_0001>
module attributes {stable_mosaic.version = 11 : i64} {
  func.func @_down_kernel(%arg0: i32, %arg1: memref<1x4x4x64xf32, #tpu.memory_space<vmem>>, %arg2: memref<9x64xf32, #tpu.memory_space<vmem>>, %arg3: memref<4x324xf32, #tpu.memory_space<vmem>>, %arg4: memref<4x1xf32, #tpu.memory_space<vmem>>, %arg5: memref<8x324xf32, #tpu.memory_space<vmem>>, %arg6: memref<8x1xf32, #tpu.memory_space<vmem>>, %arg7: memref<1x8x64xf32, #tpu.memory_space<vmem>>, %arg8: memref<36x82xf32, #tpu.memory_space<vmem>>, %arg9: memref<324x64xf32, #tpu.memory_space<vmem>>, %arg10: memref<36x82xf32, #tpu.memory_space<vmem>>, %arg11: memref<324x64xf32, #tpu.memory_space<vmem>>) attributes {dimension_semantics = [#tpu.dimension_semantics<parallel>], iteration_bounds = array<i64: 2>, scalar_prefetch = 0 : i64, scratch_operands = 4 : i64, tpu.core_type = #tpu.core_type<tc>, window_params = [{transform_indices = @transform_0, window_bounds = array<i64: 1, 4, 4, 64>}, {pipeline_mode = #tpu.pipeline_mode<synchronous>, transform_indices = @transform_1, window_bounds = array<i64: 9, 64>}, {pipeline_mode = #tpu.pipeline_mode<synchronous>, transform_indices = @transform_2, window_bounds = array<i64: 4, 324>}, {pipeline_mode = #tpu.pipeline_mode<synchronous>, transform_indices = @transform_3, window_bounds = array<i64: 4, 1>}, {pipeline_mode = #tpu.pipeline_mode<synchronous>, transform_indices = @transform_4, window_bounds = array<i64: 8, 324>}, {pipeline_mode = #tpu.pipeline_mode<synchronous>, transform_indices = @transform_5, window_bounds = array<i64: 8, 1>}, {transform_indices = @transform_6, window_bounds = array<i64: 1, 8, 64>}]} {
    %c0 = arith.constant 0 : index
    %c0_0 = arith.constant 0 : index
    %0 = vector.load %arg2[%c0, %c0_0] : memref<9x64xf32, #tpu.memory_space<vmem>>, vector<9x64xf32>
    %c0_1 = arith.constant 0 : index
    %c0_2 = arith.constant 0 : index
    %c0_3 = arith.constant 0 : index
    %c0_4 = arith.constant 0 : index
    %1 = vector.load %arg1[%c0_1, %c0_2, %c0_3, %c0_4] : memref<1x4x4x64xf32, #tpu.memory_space<vmem>>, vector<1x4x4x64xf32>
    %2 = vector.shape_cast %1 : vector<1x4x4x64xf32> to vector<4x4x64xf32>
    %cst = arith.constant dense<0xFF800000> : vector<4x64xf32>
    %3 = vector.multi_reduction <maximumf>, %2, %cst [0] : vector<4x4x64xf32> to vector<4x64xf32>
    %c0_5 = arith.constant 0 : index
    %c0_6 = arith.constant 0 : index
    %4 = vector.load %arg3[%c0_5, %c0_6] : memref<4x324xf32, #tpu.memory_space<vmem>>, vector<4x324xf32>
    %c0_7 = arith.constant 0 : index
    %c0_8 = arith.constant 0 : index
    %5 = vector.load %arg4[%c0_7, %c0_8] : memref<4x1xf32, #tpu.memory_space<vmem>>, vector<4x1xf32>
    %cst_9 = arith.constant 0.000000e+00 : f32
    %6 = vector.broadcast %cst_9 : f32 to vector<36x82xf32>
    %c0_10 = arith.constant 0 : index
    %c0_11 = arith.constant 0 : index
    %7 = vector.load %arg8[%c0_10, %c0_11] : memref<36x82xf32, #tpu.memory_space<vmem>>, vector<36x82xf32>
    tpu.vector_store %arg8[%c0_10, %c0_11], %6 {strides = array<i32>} : memref<36x82xf32, #tpu.memory_space<vmem>>, vector<36x82xf32>,
    %8 = arith.negf %3 : vector<4x64xf32>
    %9 = math.exp %8 : vector<4x64xf32>
    %cst_12 = arith.constant 1.000000e+00 : f32
    %10 = vector.broadcast %cst_12 : f32 to vector<4x64xf32>
    %11 = arith.addf %10, %9 : vector<4x64xf32>
    %12 = arith.divf %10, %11 : vector<4x64xf32>
    %13 = arith.mulf %3, %12 : vector<4x64xf32>
    %c0_13 = arith.constant 0 : index
    %c9 = arith.constant 9 : index
    %14 = vector.load %arg8[%c0_13, %c9] : memref<36x82xf32, #tpu.memory_space<vmem>>, vector<4x64xf32>
    tpu.vector_store %arg8[%c0_13, %c9], %13 {strides = array<i32>} : memref<36x82xf32, #tpu.memory_space<vmem>>, vector<4x64xf32>,
    %cst_14 = arith.constant -2.000000e+00 : f32
    %15 = vector.broadcast %cst_14 : f32 to vector<4x64xf32>
    %16 = arith.subf %3, %15 : vector<4x64xf32>
    %cst_15 = arith.constant 1.750000e+00 : f32
    %17 = vector.broadcast %cst_15 : f32 to vector<4x64xf32>
    %18 = arith.mulf %16, %17 : vector<4x64xf32>
    %19 = arith.mulf %18, %18 : vector<4x64xf32>
    %cst_16 = arith.constant 0.000000e+00 : f32
    %20 = vector.broadcast %cst_16 : f32 to vector<4x64xf32>
    %21 = arith.subf %20, %19 : vector<4x64xf32>
    %22 = math.exp %21 : vector<4x64xf32>
    %c4 = arith.constant 4 : index
    %c9_17 = arith.constant 9 : index
    %23 = vector.load %arg8[%c4, %c9_17] : memref<36x82xf32, #tpu.memory_space<vmem>>, vector<4x64xf32>
    tpu.vector_store %arg8[%c4, %c9_17], %22 {strides = array<i32>} : memref<36x82xf32, #tpu.memory_space<vmem>>, vector<4x64xf32>,
    %cst_18 = arith.constant -1.42857146 : f32
    %24 = vector.broadcast %cst_18 : f32 to vector<4x64xf32>
    %25 = arith.subf %3, %24 : vector<4x64xf32>
    %cst_19 = arith.constant 1.750000e+00 : f32
    %26 = vector.broadcast %cst_19 : f32 to vector<4x64xf32>
    %27 = arith.mulf %25, %26 : vector<4x64xf32>
    %28 = arith.mulf %27, %27 : vector<4x64xf32>
    %cst_20 = arith.constant 0.000000e+00 : f32
    %29 = vector.broadcast %cst_20 : f32 to vector<4x64xf32>
    %30 = arith.subf %29, %28 : vector<4x64xf32>
    %31 = math.exp %30 : vector<4x64xf32>
    %c8 = arith.constant 8 : index
    %c9_21 = arith.constant 9 : index
    %32 = vector.load %arg8[%c8, %c9_21] : memref<36x82xf32, #tpu.memory_space<vmem>>, vector<4x64xf32>
    tpu.vector_store %arg8[%c8, %c9_21], %31 {strides = array<i32>} : memref<36x82xf32, #tpu.memory_space<vmem>>, vector<4x64xf32>,
    %cst_22 = arith.constant -0.857142865 : f32
    %33 = vector.broadcast %cst_22 : f32 to vector<4x64xf32>
    %34 = arith.subf %3, %33 : vector<4x64xf32>
    %cst_23 = arith.constant 1.750000e+00 : f32
    %35 = vector.broadcast %cst_23 : f32 to vector<4x64xf32>
    %36 = arith.mulf %34, %35 : vector<4x64xf32>
    %37 = arith.mulf %36, %36 : vector<4x64xf32>
    %cst_24 = arith.constant 0.000000e+00 : f32
    %38 = vector.broadcast %cst_24 : f32 to vector<4x64xf32>
    %39 = arith.subf %38, %37 : vector<4x64xf32>
    %40 = math.exp %39 : vector<4x64xf32>
    %c12 = arith.constant 12 : index
    %c9_25 = arith.constant 9 : index
    %41 = vector.load %arg8[%c12, %c9_25] : memref<36x82xf32, #tpu.memory_space<vmem>>, vector<4x64xf32>
    tpu.vector_store %arg8[%c12, %c9_25], %40 {strides = array<i32>} : memref<36x82xf32, #tpu.memory_space<vmem>>, vector<4x64xf32>,
    %cst_26 = arith.constant -0.285714298 : f32
    %42 = vector.broadcast %cst_26 : f32 to vector<4x64xf32>
    %43 = arith.subf %3, %42 : vector<4x64xf32>
    %cst_27 = arith.constant 1.750000e+00 : f32
    %44 = vector.broadcast %cst_27 : f32 to vector<4x64xf32>
    %45 = arith.mulf %43, %44 : vector<4x64xf32>
    %46 = arith.mulf %45, %45 : vector<4x64xf32>
    %cst_28 = arith.constant 0.000000e+00 : f32
    %47 = vector.broadcast %cst_28 : f32 to vector<4x64xf32>
    %48 = arith.subf %47, %46 : vector<4x64xf32>
    %49 = math.exp %48 : vector<4x64xf32>
    %c16 = arith.constant 16 : index
    %c9_29 = arith.constant 9 : index
    %50 = vector.load %arg8[%c16, %c9_29] : memref<36x82xf32, #tpu.memory_space<vmem>>, vector<4x64xf32>
    tpu.vector_store %arg8[%c16, %c9_29], %49 {strides = array<i32>} : memref<36x82xf32, #tpu.memory_space<vmem>>, vector<4x64xf32>,
    %cst_30 = arith.constant 0.285714298 : f32
    %51 = vector.broadcast %cst_30 : f32 to vector<4x64xf32>
    %52 = arith.subf %3, %51 : vector<4x64xf32>
    %cst_31 = arith.constant 1.750000e+00 : f32
    %53 = vector.broadcast %cst_31 : f32 to vector<4x64xf32>
    %54 = arith.mulf %52, %53 : vector<4x64xf32>
    %55 = arith.mulf %54, %54 : vector<4x64xf32>
    %cst_32 = arith.constant 0.000000e+00 : f32
    %56 = vector.broadcast %cst_32 : f32 to vector<4x64xf32>
    %57 = arith.subf %56, %55 : vector<4x64xf32>
    %58 = math.exp %57 : vector<4x64xf32>
    %c20 = arith.constant 20 : index
    %c9_33 = arith.constant 9 : index
    %59 = vector.load %arg8[%c20, %c9_33] : memref<36x82xf32, #tpu.memory_space<vmem>>, vector<4x64xf32>
    tpu.vector_store %arg8[%c20, %c9_33], %58 {strides = array<i32>} : memref<36x82xf32, #tpu.memory_space<vmem>>, vector<4x64xf32>,
    %cst_34 = arith.constant 0.857142865 : f32
    %60 = vector.broadcast %cst_34 : f32 to vector<4x64xf32>
    %61 = arith.subf %3, %60 : vector<4x64xf32>
    %cst_35 = arith.constant 1.750000e+00 : f32
    %62 = vector.broadcast %cst_35 : f32 to vector<4x64xf32>
    %63 = arith.mulf %61, %62 : vector<4x64xf32>
    %64 = arith.mulf %63, %63 : vector<4x64xf32>
    %cst_36 = arith.constant 0.000000e+00 : f32
    %65 = vector.broadcast %cst_36 : f32 to vector<4x64xf32>
    %66 = arith.subf %65, %64 : vector<4x64xf32>
    %67 = math.exp %66 : vector<4x64xf32>
    %c24 = arith.constant 24 : index
    %c9_37 = arith.constant 9 : index
    %68 = vector.load %arg8[%c24, %c9_37] : memref<36x82xf32, #tpu.memory_space<vmem>>, vector<4x64xf32>
    tpu.vector_store %arg8[%c24, %c9_37], %67 {strides = array<i32>} : memref<36x82xf32, #tpu.memory_space<vmem>>, vector<4x64xf32>,
    %cst_38 = arith.constant 1.42857146 : f32
    %69 = vector.broadcast %cst_38 : f32 to vector<4x64xf32>
    %70 = arith.subf %3, %69 : vector<4x64xf32>
    %cst_39 = arith.constant 1.750000e+00 : f32
    %71 = vector.broadcast %cst_39 : f32 to vector<4x64xf32>
    %72 = arith.mulf %70, %71 : vector<4x64xf32>
    %73 = arith.mulf %72, %72 : vector<4x64xf32>
    %cst_40 = arith.constant 0.000000e+00 : f32
    %74 = vector.broadcast %cst_40 : f32 to vector<4x64xf32>
    %75 = arith.subf %74, %73 : vector<4x64xf32>
    %76 = math.exp %75 : vector<4x64xf32>
    %c28 = arith.constant 28 : index
    %c9_41 = arith.constant 9 : index
    %77 = vector.load %arg8[%c28, %c9_41] : memref<36x82xf32, #tpu.memory_space<vmem>>, vector<4x64xf32>
    tpu.vector_store %arg8[%c28, %c9_41], %76 {strides = array<i32>} : memref<36x82xf32, #tpu.memory_space<vmem>>, vector<4x64xf32>,
    %cst_42 = arith.constant 2.000000e+00 : f32
    %78 = vector.broadcast %cst_42 : f32 to vector<4x64xf32>
    %79 = arith.subf %3, %78 : vector<4x64xf32>
    %cst_43 = arith.constant 1.750000e+00 : f32
    %80 = vector.broadcast %cst_43 : f32 to vector<4x64xf32>
    %81 = arith.mulf %79, %80 : vector<4x64xf32>
    %82 = arith.mulf %81, %81 : vector<4x64xf32>
    %cst_44 = arith.constant 0.000000e+00 : f32
    %83 = vector.broadcast %cst_44 : f32 to vector<4x64xf32>
    %84 = arith.subf %83, %82 : vector<4x64xf32>
    %85 = math.exp %84 : vector<4x64xf32>
    %c32 = arith.constant 32 : index
    %c9_45 = arith.constant 9 : index
    %86 = vector.load %arg8[%c32, %c9_45] : memref<36x82xf32, #tpu.memory_space<vmem>>, vector<4x64xf32>
    tpu.vector_store %arg8[%c32, %c9_45], %85 {strides = array<i32>} : memref<36x82xf32, #tpu.memory_space<vmem>>, vector<4x64xf32>,
    %c0_46 = arith.constant 0 : index
    %c0_47 = arith.constant 0 : index
    %87 = vector.load %arg8[%c0_46, %c0_47] : memref<36x82xf32, #tpu.memory_space<vmem>>, vector<36x64xf32>
    %88 = vector.extract_strided_slice %0 {offsets = [0, 0], sizes = [1, 64], strides = [1, 1]} : vector<9x64xf32> to vector<1x64xf32>
    %89 = vector.broadcast %88 : vector<1x64xf32> to vector<36x64xf32>
    %90 = arith.mulf %87, %89 : vector<36x64xf32>
    %c0_48 = arith.constant 0 : index
    %c0_49 = arith.constant 0 : index
    %91 = vector.load %arg9[%c0_48, %c0_49] : memref<324x64xf32, #tpu.memory_space<vmem>>, vector<36x64xf32>
    tpu.vector_store %arg9[%c0_48, %c0_49], %90 {strides = array<i32>} : memref<324x64xf32, #tpu.memory_space<vmem>>, vector<36x64xf32>,
    %c0_50 = arith.constant 0 : index
    %c1 = arith.constant 1 : index
    %92 = vector.load %arg8[%c0_50, %c1] : memref<36x82xf32, #tpu.memory_space<vmem>>, vector<36x64xf32>
    %93 = vector.extract_strided_slice %0 {offsets = [1, 0], sizes = [1, 64], strides = [1, 1]} : vector<9x64xf32> to vector<1x64xf32>
    %94 = vector.broadcast %93 : vector<1x64xf32> to vector<36x64xf32>
    %95 = arith.mulf %92, %94 : vector<36x64xf32>
    %c36 = arith.constant 36 : index
    %c0_51 = arith.constant 0 : index
    %96 = vector.load %arg9[%c36, %c0_51] : memref<324x64xf32, #tpu.memory_space<vmem>>, vector<36x64xf32>
    tpu.vector_store %arg9[%c36, %c0_51], %95 {strides = array<i32>} : memref<324x64xf32, #tpu.memory_space<vmem>>, vector<36x64xf32>,
    %c0_52 = arith.constant 0 : index
    %c2 = arith.constant 2 : index
    %97 = vector.load %arg8[%c0_52, %c2] : memref<36x82xf32, #tpu.memory_space<vmem>>, vector<36x64xf32>
    %98 = vector.extract_strided_slice %0 {offsets = [2, 0], sizes = [1, 64], strides = [1, 1]} : vector<9x64xf32> to vector<1x64xf32>
    %99 = vector.broadcast %98 : vector<1x64xf32> to vector<36x64xf32>
    %100 = arith.mulf %97, %99 : vector<36x64xf32>
    %c72 = arith.constant 72 : index
    %c0_53 = arith.constant 0 : index
    %101 = vector.load %arg9[%c72, %c0_53] : memref<324x64xf32, #tpu.memory_space<vmem>>, vector<36x64xf32>
    tpu.vector_store %arg9[%c72, %c0_53], %100 {strides = array<i32>} : memref<324x64xf32, #tpu.memory_space<vmem>>, vector<36x64xf32>,
    %c0_54 = arith.constant 0 : index
    %c8_55 = arith.constant 8 : index
    %102 = vector.load %arg8[%c0_54, %c8_55] : memref<36x82xf32, #tpu.memory_space<vmem>>, vector<36x64xf32>
    %103 = vector.extract_strided_slice %0 {offsets = [3, 0], sizes = [1, 64], strides = [1, 1]} : vector<9x64xf32> to vector<1x64xf32>
    %104 = vector.broadcast %103 : vector<1x64xf32> to vector<36x64xf32>
    %105 = arith.mulf %102, %104 : vector<36x64xf32>
    %c108 = arith.constant 108 : index
    %c0_56 = arith.constant 0 : index
    %106 = vector.load %arg9[%c108, %c0_56] : memref<324x64xf32, #tpu.memory_space<vmem>>, vector<36x64xf32>
    tpu.vector_store %arg9[%c108, %c0_56], %105 {strides = array<i32>} : memref<324x64xf32, #tpu.memory_space<vmem>>, vector<36x64xf32>,
    %c0_57 = arith.constant 0 : index
    %c9_58 = arith.constant 9 : index
    %107 = vector.load %arg8[%c0_57, %c9_58] : memref<36x82xf32, #tpu.memory_space<vmem>>, vector<36x64xf32>
    %108 = vector.extract_strided_slice %0 {offsets = [4, 0], sizes = [1, 64], strides = [1, 1]} : vector<9x64xf32> to vector<1x64xf32>
    %109 = vector.broadcast %108 : vector<1x64xf32> to vector<36x64xf32>
    %110 = arith.mulf %107, %109 : vector<36x64xf32>
    %c144 = arith.constant 144 : index
    %c0_59 = arith.constant 0 : index
    %111 = vector.load %arg9[%c144, %c0_59] : memref<324x64xf32, #tpu.memory_space<vmem>>, vector<36x64xf32>
    tpu.vector_store %arg9[%c144, %c0_59], %110 {strides = array<i32>} : memref<324x64xf32, #tpu.memory_space<vmem>>, vector<36x64xf32>,
    %c0_60 = arith.constant 0 : index
    %c10 = arith.constant 10 : index
    %112 = vector.load %arg8[%c0_60, %c10] : memref<36x82xf32, #tpu.memory_space<vmem>>, vector<36x64xf32>
    %113 = vector.extract_strided_slice %0 {offsets = [5, 0], sizes = [1, 64], strides = [1, 1]} : vector<9x64xf32> to vector<1x64xf32>
    %114 = vector.broadcast %113 : vector<1x64xf32> to vector<36x64xf32>
    %115 = arith.mulf %112, %114 : vector<36x64xf32>
    %c180 = arith.constant 180 : index
    %c0_61 = arith.constant 0 : index
    %116 = vector.load %arg9[%c180, %c0_61] : memref<324x64xf32, #tpu.memory_space<vmem>>, vector<36x64xf32>
    tpu.vector_store %arg9[%c180, %c0_61], %115 {strides = array<i32>} : memref<324x64xf32, #tpu.memory_space<vmem>>, vector<36x64xf32>,
    %c0_62 = arith.constant 0 : index
    %c16_63 = arith.constant 16 : index
    %117 = vector.load %arg8[%c0_62, %c16_63] : memref<36x82xf32, #tpu.memory_space<vmem>>, vector<36x64xf32>
    %118 = vector.extract_strided_slice %0 {offsets = [6, 0], sizes = [1, 64], strides = [1, 1]} : vector<9x64xf32> to vector<1x64xf32>
    %119 = vector.broadcast %118 : vector<1x64xf32> to vector<36x64xf32>
    %120 = arith.mulf %117, %119 : vector<36x64xf32>
    %c216 = arith.constant 216 : index
    %c0_64 = arith.constant 0 : index
    %121 = vector.load %arg9[%c216, %c0_64] : memref<324x64xf32, #tpu.memory_space<vmem>>, vector<36x64xf32>
    tpu.vector_store %arg9[%c216, %c0_64], %120 {strides = array<i32>} : memref<324x64xf32, #tpu.memory_space<vmem>>, vector<36x64xf32>,
    %c0_65 = arith.constant 0 : index
    %c17 = arith.constant 17 : index
    %122 = vector.load %arg8[%c0_65, %c17] : memref<36x82xf32, #tpu.memory_space<vmem>>, vector<36x64xf32>
    %123 = vector.extract_strided_slice %0 {offsets = [7, 0], sizes = [1, 64], strides = [1, 1]} : vector<9x64xf32> to vector<1x64xf32>
    %124 = vector.broadcast %123 : vector<1x64xf32> to vector<36x64xf32>
    %125 = arith.mulf %122, %124 : vector<36x64xf32>
    %c252 = arith.constant 252 : index
    %c0_66 = arith.constant 0 : index
    %126 = vector.load %arg9[%c252, %c0_66] : memref<324x64xf32, #tpu.memory_space<vmem>>, vector<36x64xf32>
    tpu.vector_store %arg9[%c252, %c0_66], %125 {strides = array<i32>} : memref<324x64xf32, #tpu.memory_space<vmem>>, vector<36x64xf32>,
    %c0_67 = arith.constant 0 : index
    %c18 = arith.constant 18 : index
    %127 = vector.load %arg8[%c0_67, %c18] : memref<36x82xf32, #tpu.memory_space<vmem>>, vector<36x64xf32>
    %128 = vector.extract_strided_slice %0 {offsets = [8, 0], sizes = [1, 64], strides = [1, 1]} : vector<9x64xf32> to vector<1x64xf32>
    %129 = vector.broadcast %128 : vector<1x64xf32> to vector<36x64xf32>
    %130 = arith.mulf %127, %129 : vector<36x64xf32>
    %c288 = arith.constant 288 : index
    %c0_68 = arith.constant 0 : index
    %131 = vector.load %arg9[%c288, %c0_68] : memref<324x64xf32, #tpu.memory_space<vmem>>, vector<36x64xf32>
    tpu.vector_store %arg9[%c288, %c0_68], %130 {strides = array<i32>} : memref<324x64xf32, #tpu.memory_space<vmem>>, vector<36x64xf32>,
    %c0_69 = arith.constant 0 : index
    %c0_70 = arith.constant 0 : index
    %132 = vector.load %arg9[%c0_69, %c0_70] : memref<324x64xf32, #tpu.memory_space<vmem>>, vector<324x64xf32>
    %cst_71 = arith.constant dense<0.000000e+00> : vector<4x64xf32>
    %133 = tpu.matmul %4, %132, %cst_71 {dimension_numbers = #tpu.dot_dimension_numbers<[1], [0], [0], [1], [0, 0, 1, 1], [], []>} : vector<4x324xf32>, vector<324x64xf32>, vector<4x64xf32> -> vector<4x64xf32>
    %134 = vector.broadcast %5 : vector<4x1xf32> to vector<4x64xf32>
    %135 = arith.addf %133, %134 : vector<4x64xf32>
    %cst_72 = arith.constant 0.000000e+00 : f32
    %136 = vector.broadcast %cst_72 : f32 to vector<4x64xf32>
    %137 = arith.maximumf %135, %136 : vector<4x64xf32>
    %c0_73 = arith.constant 0 : index
    %c0_74 = arith.constant 0 : index
    %138 = vector.load %arg5[%c0_73, %c0_74] : memref<8x324xf32, #tpu.memory_space<vmem>>, vector<8x324xf32>
    %c0_75 = arith.constant 0 : index
    %c0_76 = arith.constant 0 : index
    %139 = vector.load %arg6[%c0_75, %c0_76] : memref<8x1xf32, #tpu.memory_space<vmem>>, vector<8x1xf32>
    %cst_77 = arith.constant 0.000000e+00 : f32
    %140 = vector.broadcast %cst_77 : f32 to vector<36x82xf32>
    %c0_78 = arith.constant 0 : index
    %c0_79 = arith.constant 0 : index
    %141 = vector.load %arg10[%c0_78, %c0_79] : memref<36x82xf32, #tpu.memory_space<vmem>>, vector<36x82xf32>
    tpu.vector_store %arg10[%c0_78, %c0_79], %140 {strides = array<i32>} : memref<36x82xf32, #tpu.memory_space<vmem>>, vector<36x82xf32>,
    %142 = arith.negf %137 : vector<4x64xf32>
    %143 = math.exp %142 : vector<4x64xf32>
    %cst_80 = arith.constant 1.000000e+00 : f32
    %144 = vector.broadcast %cst_80 : f32 to vector<4x64xf32>
    %145 = arith.addf %144, %143 : vector<4x64xf32>
    %146 = arith.divf %144, %145 : vector<4x64xf32>
    %147 = arith.mulf %137, %146 : vector<4x64xf32>
    %c0_81 = arith.constant 0 : index
    %c9_82 = arith.constant 9 : index
    %148 = vector.load %arg10[%c0_81, %c9_82] : memref<36x82xf32, #tpu.memory_space<vmem>>, vector<4x64xf32>
    tpu.vector_store %arg10[%c0_81, %c9_82], %147 {strides = array<i32>} : memref<36x82xf32, #tpu.memory_space<vmem>>, vector<4x64xf32>,
    %cst_83 = arith.constant -2.000000e+00 : f32
    %149 = vector.broadcast %cst_83 : f32 to vector<4x64xf32>
    %150 = arith.subf %137, %149 : vector<4x64xf32>
    %cst_84 = arith.constant 1.750000e+00 : f32
    %151 = vector.broadcast %cst_84 : f32 to vector<4x64xf32>
    %152 = arith.mulf %150, %151 : vector<4x64xf32>
    %153 = arith.mulf %152, %152 : vector<4x64xf32>
    %cst_85 = arith.constant 0.000000e+00 : f32
    %154 = vector.broadcast %cst_85 : f32 to vector<4x64xf32>
    %155 = arith.subf %154, %153 : vector<4x64xf32>
    %156 = math.exp %155 : vector<4x64xf32>
    %c4_86 = arith.constant 4 : index
    %c9_87 = arith.constant 9 : index
    %157 = vector.load %arg10[%c4_86, %c9_87] : memref<36x82xf32, #tpu.memory_space<vmem>>, vector<4x64xf32>
    tpu.vector_store %arg10[%c4_86, %c9_87], %156 {strides = array<i32>} : memref<36x82xf32, #tpu.memory_space<vmem>>, vector<4x64xf32>,
    %cst_88 = arith.constant -1.42857146 : f32
    %158 = vector.broadcast %cst_88 : f32 to vector<4x64xf32>
    %159 = arith.subf %137, %158 : vector<4x64xf32>
    %cst_89 = arith.constant 1.750000e+00 : f32
    %160 = vector.broadcast %cst_89 : f32 to vector<4x64xf32>
    %161 = arith.mulf %159, %160 : vector<4x64xf32>
    %162 = arith.mulf %161, %161 : vector<4x64xf32>
    %cst_90 = arith.constant 0.000000e+00 : f32
    %163 = vector.broadcast %cst_90 : f32 to vector<4x64xf32>
    %164 = arith.subf %163, %162 : vector<4x64xf32>
    %165 = math.exp %164 : vector<4x64xf32>
    %c8_91 = arith.constant 8 : index
    %c9_92 = arith.constant 9 : index
    %166 = vector.load %arg10[%c8_91, %c9_92] : memref<36x82xf32, #tpu.memory_space<vmem>>, vector<4x64xf32>
    tpu.vector_store %arg10[%c8_91, %c9_92], %165 {strides = array<i32>} : memref<36x82xf32, #tpu.memory_space<vmem>>, vector<4x64xf32>,
    %cst_93 = arith.constant -0.857142865 : f32
    %167 = vector.broadcast %cst_93 : f32 to vector<4x64xf32>
    %168 = arith.subf %137, %167 : vector<4x64xf32>
    %cst_94 = arith.constant 1.750000e+00 : f32
    %169 = vector.broadcast %cst_94 : f32 to vector<4x64xf32>
    %170 = arith.mulf %168, %169 : vector<4x64xf32>
    %171 = arith.mulf %170, %170 : vector<4x64xf32>
    %cst_95 = arith.constant 0.000000e+00 : f32
    %172 = vector.broadcast %cst_95 : f32 to vector<4x64xf32>
    %173 = arith.subf %172, %171 : vector<4x64xf32>
    %174 = math.exp %173 : vector<4x64xf32>
    %c12_96 = arith.constant 12 : index
    %c9_97 = arith.constant 9 : index
    %175 = vector.load %arg10[%c12_96, %c9_97] : memref<36x82xf32, #tpu.memory_space<vmem>>, vector<4x64xf32>
    tpu.vector_store %arg10[%c12_96, %c9_97], %174 {strides = array<i32>} : memref<36x82xf32, #tpu.memory_space<vmem>>, vector<4x64xf32>,
    %cst_98 = arith.constant -0.285714298 : f32
    %176 = vector.broadcast %cst_98 : f32 to vector<4x64xf32>
    %177 = arith.subf %137, %176 : vector<4x64xf32>
    %cst_99 = arith.constant 1.750000e+00 : f32
    %178 = vector.broadcast %cst_99 : f32 to vector<4x64xf32>
    %179 = arith.mulf %177, %178 : vector<4x64xf32>
    %180 = arith.mulf %179, %179 : vector<4x64xf32>
    %cst_100 = arith.constant 0.000000e+00 : f32
    %181 = vector.broadcast %cst_100 : f32 to vector<4x64xf32>
    %182 = arith.subf %181, %180 : vector<4x64xf32>
    %183 = math.exp %182 : vector<4x64xf32>
    %c16_101 = arith.constant 16 : index
    %c9_102 = arith.constant 9 : index
    %184 = vector.load %arg10[%c16_101, %c9_102] : memref<36x82xf32, #tpu.memory_space<vmem>>, vector<4x64xf32>
    tpu.vector_store %arg10[%c16_101, %c9_102], %183 {strides = array<i32>} : memref<36x82xf32, #tpu.memory_space<vmem>>, vector<4x64xf32>,
    %cst_103 = arith.constant 0.285714298 : f32
    %185 = vector.broadcast %cst_103 : f32 to vector<4x64xf32>
    %186 = arith.subf %137, %185 : vector<4x64xf32>
    %cst_104 = arith.constant 1.750000e+00 : f32
    %187 = vector.broadcast %cst_104 : f32 to vector<4x64xf32>
    %188 = arith.mulf %186, %187 : vector<4x64xf32>
    %189 = arith.mulf %188, %188 : vector<4x64xf32>
    %cst_105 = arith.constant 0.000000e+00 : f32
    %190 = vector.broadcast %cst_105 : f32 to vector<4x64xf32>
    %191 = arith.subf %190, %189 : vector<4x64xf32>
    %192 = math.exp %191 : vector<4x64xf32>
    %c20_106 = arith.constant 20 : index
    %c9_107 = arith.constant 9 : index
    %193 = vector.load %arg10[%c20_106, %c9_107] : memref<36x82xf32, #tpu.memory_space<vmem>>, vector<4x64xf32>
    tpu.vector_store %arg10[%c20_106, %c9_107], %192 {strides = array<i32>} : memref<36x82xf32, #tpu.memory_space<vmem>>, vector<4x64xf32>,
    %cst_108 = arith.constant 0.857142865 : f32
    %194 = vector.broadcast %cst_108 : f32 to vector<4x64xf32>
    %195 = arith.subf %137, %194 : vector<4x64xf32>
    %cst_109 = arith.constant 1.750000e+00 : f32
    %196 = vector.broadcast %cst_109 : f32 to vector<4x64xf32>
    %197 = arith.mulf %195, %196 : vector<4x64xf32>
    %198 = arith.mulf %197, %197 : vector<4x64xf32>
    %cst_110 = arith.constant 0.000000e+00 : f32
    %199 = vector.broadcast %cst_110 : f32 to vector<4x64xf32>
    %200 = arith.subf %199, %198 : vector<4x64xf32>
    %201 = math.exp %200 : vector<4x64xf32>
    %c24_111 = arith.constant 24 : index
    %c9_112 = arith.constant 9 : index
    %202 = vector.load %arg10[%c24_111, %c9_112] : memref<36x82xf32, #tpu.memory_space<vmem>>, vector<4x64xf32>
    tpu.vector_store %arg10[%c24_111, %c9_112], %201 {strides = array<i32>} : memref<36x82xf32, #tpu.memory_space<vmem>>, vector<4x64xf32>,
    %cst_113 = arith.constant 1.42857146 : f32
    %203 = vector.broadcast %cst_113 : f32 to vector<4x64xf32>
    %204 = arith.subf %137, %203 : vector<4x64xf32>
    %cst_114 = arith.constant 1.750000e+00 : f32
    %205 = vector.broadcast %cst_114 : f32 to vector<4x64xf32>
    %206 = arith.mulf %204, %205 : vector<4x64xf32>
    %207 = arith.mulf %206, %206 : vector<4x64xf32>
    %cst_115 = arith.constant 0.000000e+00 : f32
    %208 = vector.broadcast %cst_115 : f32 to vector<4x64xf32>
    %209 = arith.subf %208, %207 : vector<4x64xf32>
    %210 = math.exp %209 : vector<4x64xf32>
    %c28_116 = arith.constant 28 : index
    %c9_117 = arith.constant 9 : index
    %211 = vector.load %arg10[%c28_116, %c9_117] : memref<36x82xf32, #tpu.memory_space<vmem>>, vector<4x64xf32>
    tpu.vector_store %arg10[%c28_116, %c9_117], %210 {strides = array<i32>} : memref<36x82xf32, #tpu.memory_space<vmem>>, vector<4x64xf32>,
    %cst_118 = arith.constant 2.000000e+00 : f32
    %212 = vector.broadcast %cst_118 : f32 to vector<4x64xf32>
    %213 = arith.subf %137, %212 : vector<4x64xf32>
    %cst_119 = arith.constant 1.750000e+00 : f32
    %214 = vector.broadcast %cst_119 : f32 to vector<4x64xf32>
    %215 = arith.mulf %213, %214 : vector<4x64xf32>
    %216 = arith.mulf %215, %215 : vector<4x64xf32>
    %cst_120 = arith.constant 0.000000e+00 : f32
    %217 = vector.broadcast %cst_120 : f32 to vector<4x64xf32>
    %218 = arith.subf %217, %216 : vector<4x64xf32>
    %219 = math.exp %218 : vector<4x64xf32>
    %c32_121 = arith.constant 32 : index
    %c9_122 = arith.constant 9 : index
    %220 = vector.load %arg10[%c32_121, %c9_122] : memref<36x82xf32, #tpu.memory_space<vmem>>, vector<4x64xf32>
    tpu.vector_store %arg10[%c32_121, %c9_122], %219 {strides = array<i32>} : memref<36x82xf32, #tpu.memory_space<vmem>>, vector<4x64xf32>,
    %c0_123 = arith.constant 0 : index
    %c0_124 = arith.constant 0 : index
    %221 = vector.load %arg10[%c0_123, %c0_124] : memref<36x82xf32, #tpu.memory_space<vmem>>, vector<36x64xf32>
    %222 = vector.extract_strided_slice %0 {offsets = [0, 0], sizes = [1, 64], strides = [1, 1]} : vector<9x64xf32> to vector<1x64xf32>
    %223 = vector.broadcast %222 : vector<1x64xf32> to vector<36x64xf32>
    %224 = arith.mulf %221, %223 : vector<36x64xf32>
    %c0_125 = arith.constant 0 : index
    %c0_126 = arith.constant 0 : index
    %225 = vector.load %arg11[%c0_125, %c0_126] : memref<324x64xf32, #tpu.memory_space<vmem>>, vector<36x64xf32>
    tpu.vector_store %arg11[%c0_125, %c0_126], %224 {strides = array<i32>} : memref<324x64xf32, #tpu.memory_space<vmem>>, vector<36x64xf32>,
    %c0_127 = arith.constant 0 : index
    %c1_128 = arith.constant 1 : index
    %226 = vector.load %arg10[%c0_127, %c1_128] : memref<36x82xf32, #tpu.memory_space<vmem>>, vector<36x64xf32>
    %227 = vector.extract_strided_slice %0 {offsets = [1, 0], sizes = [1, 64], strides = [1, 1]} : vector<9x64xf32> to vector<1x64xf32>
    %228 = vector.broadcast %227 : vector<1x64xf32> to vector<36x64xf32>
    %229 = arith.mulf %226, %228 : vector<36x64xf32>
    %c36_129 = arith.constant 36 : index
    %c0_130 = arith.constant 0 : index
    %230 = vector.load %arg11[%c36_129, %c0_130] : memref<324x64xf32, #tpu.memory_space<vmem>>, vector<36x64xf32>
    tpu.vector_store %arg11[%c36_129, %c0_130], %229 {strides = array<i32>} : memref<324x64xf32, #tpu.memory_space<vmem>>, vector<36x64xf32>,
    %c0_131 = arith.constant 0 : index
    %c2_132 = arith.constant 2 : index
    %231 = vector.load %arg10[%c0_131, %c2_132] : memref<36x82xf32, #tpu.memory_space<vmem>>, vector<36x64xf32>
    %232 = vector.extract_strided_slice %0 {offsets = [2, 0], sizes = [1, 64], strides = [1, 1]} : vector<9x64xf32> to vector<1x64xf32>
    %233 = vector.broadcast %232 : vector<1x64xf32> to vector<36x64xf32>
    %234 = arith.mulf %231, %233 : vector<36x64xf32>
    %c72_133 = arith.constant 72 : index
    %c0_134 = arith.constant 0 : index
    %235 = vector.load %arg11[%c72_133, %c0_134] : memref<324x64xf32, #tpu.memory_space<vmem>>, vector<36x64xf32>
    tpu.vector_store %arg11[%c72_133, %c0_134], %234 {strides = array<i32>} : memref<324x64xf32, #tpu.memory_space<vmem>>, vector<36x64xf32>,
    %c0_135 = arith.constant 0 : index
    %c8_136 = arith.constant 8 : index
    %236 = vector.load %arg10[%c0_135, %c8_136] : memref<36x82xf32, #tpu.memory_space<vmem>>, vector<36x64xf32>
    %237 = vector.extract_strided_slice %0 {offsets = [3, 0], sizes = [1, 64], strides = [1, 1]} : vector<9x64xf32> to vector<1x64xf32>
    %238 = vector.broadcast %237 : vector<1x64xf32> to vector<36x64xf32>
    %239 = arith.mulf %236, %238 : vector<36x64xf32>
    %c108_137 = arith.constant 108 : index
    %c0_138 = arith.constant 0 : index
    %240 = vector.load %arg11[%c108_137, %c0_138] : memref<324x64xf32, #tpu.memory_space<vmem>>, vector<36x64xf32>
    tpu.vector_store %arg11[%c108_137, %c0_138], %239 {strides = array<i32>} : memref<324x64xf32, #tpu.memory_space<vmem>>, vector<36x64xf32>,
    %c0_139 = arith.constant 0 : index
    %c9_140 = arith.constant 9 : index
    %241 = vector.load %arg10[%c0_139, %c9_140] : memref<36x82xf32, #tpu.memory_space<vmem>>, vector<36x64xf32>
    %242 = vector.extract_strided_slice %0 {offsets = [4, 0], sizes = [1, 64], strides = [1, 1]} : vector<9x64xf32> to vector<1x64xf32>
    %243 = vector.broadcast %242 : vector<1x64xf32> to vector<36x64xf32>
    %244 = arith.mulf %241, %243 : vector<36x64xf32>
    %c144_141 = arith.constant 144 : index
    %c0_142 = arith.constant 0 : index
    %245 = vector.load %arg11[%c144_141, %c0_142] : memref<324x64xf32, #tpu.memory_space<vmem>>, vector<36x64xf32>
    tpu.vector_store %arg11[%c144_141, %c0_142], %244 {strides = array<i32>} : memref<324x64xf32, #tpu.memory_space<vmem>>, vector<36x64xf32>,
    %c0_143 = arith.constant 0 : index
    %c10_144 = arith.constant 10 : index
    %246 = vector.load %arg10[%c0_143, %c10_144] : memref<36x82xf32, #tpu.memory_space<vmem>>, vector<36x64xf32>
    %247 = vector.extract_strided_slice %0 {offsets = [5, 0], sizes = [1, 64], strides = [1, 1]} : vector<9x64xf32> to vector<1x64xf32>
    %248 = vector.broadcast %247 : vector<1x64xf32> to vector<36x64xf32>
    %249 = arith.mulf %246, %248 : vector<36x64xf32>
    %c180_145 = arith.constant 180 : index
    %c0_146 = arith.constant 0 : index
    %250 = vector.load %arg11[%c180_145, %c0_146] : memref<324x64xf32, #tpu.memory_space<vmem>>, vector<36x64xf32>
    tpu.vector_store %arg11[%c180_145, %c0_146], %249 {strides = array<i32>} : memref<324x64xf32, #tpu.memory_space<vmem>>, vector<36x64xf32>,
    %c0_147 = arith.constant 0 : index
    %c16_148 = arith.constant 16 : index
    %251 = vector.load %arg10[%c0_147, %c16_148] : memref<36x82xf32, #tpu.memory_space<vmem>>, vector<36x64xf32>
    %252 = vector.extract_strided_slice %0 {offsets = [6, 0], sizes = [1, 64], strides = [1, 1]} : vector<9x64xf32> to vector<1x64xf32>
    %253 = vector.broadcast %252 : vector<1x64xf32> to vector<36x64xf32>
    %254 = arith.mulf %251, %253 : vector<36x64xf32>
    %c216_149 = arith.constant 216 : index
    %c0_150 = arith.constant 0 : index
    %255 = vector.load %arg11[%c216_149, %c0_150] : memref<324x64xf32, #tpu.memory_space<vmem>>, vector<36x64xf32>
    tpu.vector_store %arg11[%c216_149, %c0_150], %254 {strides = array<i32>} : memref<324x64xf32, #tpu.memory_space<vmem>>, vector<36x64xf32>,
    %c0_151 = arith.constant 0 : index
    %c17_152 = arith.constant 17 : index
    %256 = vector.load %arg10[%c0_151, %c17_152] : memref<36x82xf32, #tpu.memory_space<vmem>>, vector<36x64xf32>
    %257 = vector.extract_strided_slice %0 {offsets = [7, 0], sizes = [1, 64], strides = [1, 1]} : vector<9x64xf32> to vector<1x64xf32>
    %258 = vector.broadcast %257 : vector<1x64xf32> to vector<36x64xf32>
    %259 = arith.mulf %256, %258 : vector<36x64xf32>
    %c252_153 = arith.constant 252 : index
    %c0_154 = arith.constant 0 : index
    %260 = vector.load %arg11[%c252_153, %c0_154] : memref<324x64xf32, #tpu.memory_space<vmem>>, vector<36x64xf32>
    tpu.vector_store %arg11[%c252_153, %c0_154], %259 {strides = array<i32>} : memref<324x64xf32, #tpu.memory_space<vmem>>, vector<36x64xf32>,
    %c0_155 = arith.constant 0 : index
    %c18_156 = arith.constant 18 : index
    %261 = vector.load %arg10[%c0_155, %c18_156] : memref<36x82xf32, #tpu.memory_space<vmem>>, vector<36x64xf32>
    %262 = vector.extract_strided_slice %0 {offsets = [8, 0], sizes = [1, 64], strides = [1, 1]} : vector<9x64xf32> to vector<1x64xf32>
    %263 = vector.broadcast %262 : vector<1x64xf32> to vector<36x64xf32>
    %264 = arith.mulf %261, %263 : vector<36x64xf32>
    %c288_157 = arith.constant 288 : index
    %c0_158 = arith.constant 0 : index
    %265 = vector.load %arg11[%c288_157, %c0_158] : memref<324x64xf32, #tpu.memory_space<vmem>>, vector<36x64xf32>
    tpu.vector_store %arg11[%c288_157, %c0_158], %264 {strides = array<i32>} : memref<324x64xf32, #tpu.memory_space<vmem>>, vector<36x64xf32>,
    %c0_159 = arith.constant 0 : index
    %c0_160 = arith.constant 0 : index
    %266 = vector.load %arg11[%c0_159, %c0_160] : memref<324x64xf32, #tpu.memory_space<vmem>>, vector<324x64xf32>
    %cst_161 = arith.constant dense<0.000000e+00> : vector<8x64xf32>
    %267 = tpu.matmul %138, %266, %cst_161 {dimension_numbers = #tpu.dot_dimension_numbers<[1], [0], [0], [1], [0, 0, 1, 1], [], []>} : vector<8x324xf32>, vector<324x64xf32>, vector<8x64xf32> -> vector<8x64xf32>
    %268 = vector.broadcast %139 : vector<8x1xf32> to vector<8x64xf32>
    %269 = arith.addf %267, %268 : vector<8x64xf32>
    %cst_162 = arith.constant 0.000000e+00 : f32
    %270 = vector.broadcast %cst_162 : f32 to vector<8x64xf32>
    %271 = arith.maximumf %269, %270 : vector<8x64xf32>
    %c0_163 = arith.constant 0 : index
    %c0_164 = arith.constant 0 : index
    %c0_165 = arith.constant 0 : index
    %272 = vector.load %arg7[%c0_163, %c0_164, %c0_165] : memref<1x8x64xf32, #tpu.memory_space<vmem>>, vector<1x8x64xf32>
    %273 = vector.shape_cast %272 : vector<1x8x64xf32> to vector<8x64xf32>
    %274 = vector.shape_cast %271 : vector<8x64xf32> to vector<1x8x64xf32>
    tpu.vector_store %arg7[%c0_163, %c0_164, %c0_165], %274 {strides = array<i32>} : memref<1x8x64xf32, #tpu.memory_space<vmem>>, vector<1x8x64xf32>,
    return
  }
  func.func @transform_0(%arg0: i32) -> (i32, i32, i32, i32) {
    %c0_i32 = arith.constant 0 : i32
    %c0_i32_0 = arith.constant 0 : i32
    %c0_i32_1 = arith.constant 0 : i32
    %c0_i32_2 = arith.constant 0 : i32
    return %arg0, %c0_i32, %c0_i32_0, %c0_i32_1 : i32, i32, i32, i32
  }
  func.func @transform_1(%arg0: i32) -> (i32, i32) {
    %c0_i32 = arith.constant 0 : i32
    %c0_i32_0 = arith.constant 0 : i32
    %c0_i32_1 = arith.constant 0 : i32
    return %c0_i32, %c0_i32_0 : i32, i32
  }
  func.func @transform_2(%arg0: i32) -> (i32, i32) {
    %c0_i32 = arith.constant 0 : i32
    %c0_i32_0 = arith.constant 0 : i32
    %c0_i32_1 = arith.constant 0 : i32
    return %c0_i32, %c0_i32_0 : i32, i32
  }
  func.func @transform_3(%arg0: i32) -> (i32, i32) {
    %c0_i32 = arith.constant 0 : i32
    %c0_i32_0 = arith.constant 0 : i32
    %c0_i32_1 = arith.constant 0 : i32
    return %c0_i32, %c0_i32_0 : i32, i32
  }
  func.func @transform_4(%arg0: i32) -> (i32, i32) {
    %c0_i32 = arith.constant 0 : i32
    %c0_i32_0 = arith.constant 0 : i32
    %c0_i32_1 = arith.constant 0 : i32
    return %c0_i32, %c0_i32_0 : i32, i32
  }
  func.func @transform_5(%arg0: i32) -> (i32, i32) {
    %c0_i32 = arith.constant 0 : i32
    %c0_i32_0 = arith.constant 0 : i32
    %c0_i32_1 = arith.constant 0 : i32
    return %c0_i32, %c0_i32_0 : i32, i32
  }
  func.func @transform_6(%arg0: i32) -> (i32, i32, i32) {
    %c0_i32 = arith.constant 0 : i32
    %c0_i32_0 = arith.constant 0 : i32
    %c0_i32_1 = arith.constant 0 : i32
    return %arg0, %c0_i32, %c0_i32_0 : i32, i32, i32
  }
}

</mosaic_0001>

<llo_original>
// kernel: tpu_custom_call.1
$region0: #{tpu_custom_call.1}
  #allocation0 [shape = 'u32[]', space=smem, size = 0x4, offset = 0x4, fixed_abs, tag = 'smem constant byte address 0x4 - core index']
  #allocation1 [shape = 'u32[72,128]{1,0:T(1,128)}', space=vmem, size = 0x9000, scoped, tag = 'internal scratch']
  #allocation2 [shape = 'f32[36,82]{1,0:T(8,128)}', space=vmem, size = 0x5000, scoped, tag = 'scratch operand']
  #allocation3 [shape = 'f32[324,64]{1,0:T(8,128)}', space=vmem, size = 0x29000, scoped, tag = 'scratch operand']
  #allocation4 [shape = 'f32[36,82]{1,0:T(8,128)}', space=vmem, size = 0x5000, scoped, tag = 'scratch operand']
  #allocation5 [shape = 'f32[324,64]{1,0:T(8,128)}', space=vmem, size = 0x29000, scoped, tag = 'scratch operand']
  %s0 = inlined_call_operand.hbm [shape: f32[2,4,4,64], index: 0, kind: input, shape index: {}]
  %s1 = inlined_call_operand.hbm [shape: f32[9,64], index: 1, kind: input, shape index: {}]
  %s2 = inlined_call_operand.vmem [shape: f32[4,324], index: 2, kind: input, shape index: {}]
  %s3 = inlined_call_operand.vmem [shape: f32[4,1], index: 3, kind: input, shape index: {}]
  %s4 = inlined_call_operand.hbm [shape: f32[8,324], index: 4, kind: input, shape index: {}]
  %s5 = inlined_call_operand.vmem [shape: f32[8,1], index: 5, kind: input, shape index: {}]
  %s6 = inlined_call_operand.hbm [shape: f32[2,8,64], index: 6, kind: output, shape index: {}]
  %s7 = sld [smem:[#allocation0]]
  $region69: #{tpu_custom_call.1} parent=0
    _
  %s9 = ssub.s32 1, %s7
  %s10 = scalar_select 0, %s9, %s7
  $region1: #{tpu_custom_call.1} parent=0
    #allocation6 [shape = 'u8[16384]{0}', space=vmem, size = 0x4000, scoped, tag = 'input window, operand 0']
    #allocation7 [shape = 's32[2]{0}', space=sflag, size = 0x8, scoped, tag = 'scoped memory for tpu_custom_call.1']
    #allocation8 [shape = 's32[2]{0}', space=sflag, size = 0x8, scoped, tag = 'scoped memory for tpu_custom_call.1']
    #allocation9 [shape = 'u8[8192]{0}', space=vmem, size = 0x2000, scoped, tag = 'input window, operand 1, single buffered']
    #allocation10 [shape = 's32[1]{0}', space=sflag, size = 0x4, scoped, tag = 'scoped memory for tpu_custom_call.1']
    #allocation11 [shape = 'u8[12288]{0}', space=vmem, size = 0x3000, scoped, tag = 'input window, operand 4, single buffered']
    #allocation12 [shape = 'u8[8192]{0}', space=vmem, size = 0x2000, scoped, tag = 'output window, operand 0']
    %11 = vsyncpa [#allocation7], 0
    %s12 = scalar_lea.sflag [#allocation7], 1
    %13 = vsyncpa %s12, 0
    %14 = vsyncpa [#allocation10], 0
    %15 = vsyncpa [#allocation8], 0
    %s16 = scalar_lea.sflag [#allocation8], 1
    %17 = vsyncpa %s16, 0
    loop: start=0, step=1, limit=4
    $region2: #{tpu_custom_call.1} parent=1 // loop_pre_header
      _
    $region3: #{tpu_custom_call.1} parent=1 // loop_header
      %s19 = sphi 0, %s23
      %p20 = scmp.ge.s32.totalorder %s19, 4
      %s29 = sphi 0, %s31
      %s32 = sphi 0, %s29
      %s33 = sphi 0, %s32
      %s49 = sphi 0, %s33
      %s53 = sphi 0, %s53
      %s55 = sphi 0, %s53
      %s56 = sphi 0, %s55
      %s70 = sphi 0, %s56
      %s74 = sphi 0, %s74
      %s76 = sphi 0, %s74
      %s77 = sphi 0, %s76
      %s91 = sphi 0, %s77
      %s95 = sphi 0, %s95
      %s97 = sphi 0, %s95
      %s98 = sphi 0, %s97
      %s112 = sphi 0, %s98
      %s116 = sphi 0, %s116
      %s118 = sphi 0, %s116
      %s119 = sphi 0, %s118
      %s133 = sphi 0, %s119
      %s137 = sphi 0, %s137
      %s139 = sphi 0, %s137
      %s140 = sphi 0, %s139
      %s154 = sphi 0, %s140
      %s160 = sphi 0, %s162
      %s163 = sphi 0, %s160
      %s164 = sphi 0, %s163
      %s180 = sphi 0, %s164
    $region4: #{tpu_custom_call.1} parent=1 // loop_header_branch
      %22 = sbr.rel (%p20) target = $region8
    $region5: #{tpu_custom_call.1} parent=1 // loop_body
      %s24 = ssub.s32 %s19, 1
      %s25 = ssub.s32 %s19, 2
      %s26 = sadd.s32 %s19, 1
      %s27 = ssub.s32 %s19, %s26
      %p28 = scmp.eq.s32.totalorder %s27, 0
      %s30 = sadd.s32 %s29, 1
      %s31 = scalar_select %p28, %s29, %s30
      %p34 = pneg %p28
      %p35 = scmp.eq.s32.totalorder %s19, 1
      %p36 = por %p34, %p35
      %p37 = scmp.ne.s32.totalorder %s29, %s32
      %p38 = scmp.eq.s32.totalorder %s19, 0
      %p39 = por %p37, %p38
      %p40 = scmp.ne.s32.totalorder %s29, %s32
      %p41 = scmp.eq.s32.totalorder %s24, 1
      %p42 = por %p40, %p41
      %p43 = scmp.ne.s32.totalorder %s32, %s33
      %p44 = scmp.eq.s32.totalorder %s24, 0
      %p45 = por %p43, %p44
      %p46 = scmp.ne.s32.totalorder %s32, %s33
      %p47 = scmp.eq.s32.totalorder %s25, 1
      %p48 = por %p46, %p47
      %p50 = scmp.ne.s32.totalorder %s33, %s49
      %p51 = scmp.eq.s32.totalorder %s25, 0
      %p52 = por %p50, %p51
      %s54 = sadd.s32 %s53, 1
      %p57 = scmp.eq.s32.totalorder %s19, 1
      %p58 = scmp.ne.s32.totalorder %s53, %s55
      %p59 = scmp.eq.s32.totalorder %s19, 0
      %p60 = por %p58, %p59
      %p61 = scmp.ne.s32.totalorder %s53, %s55
      %p62 = scmp.eq.s32.totalorder %s24, 1
      %p63 = por %p61, %p62
      %p64 = scmp.ne.s32.totalorder %s55, %s56
      %p65 = scmp.eq.s32.totalorder %s24, 0
      %p66 = por %p64, %p65
      %p67 = scmp.ne.s32.totalorder %s55, %s56
      %p68 = scmp.eq.s32.totalorder %s25, 1
      %p69 = por %p67, %p68
      %p71 = scmp.ne.s32.totalorder %s56, %s70
      %p72 = scmp.eq.s32.totalorder %s25, 0
      %p73 = por %p71, %p72
      %s75 = sadd.s32 %s74, 1
      %p78 = scmp.eq.s32.totalorder %s19, 1
      %p79 = scmp.ne.s32.totalorder %s74, %s76
      %p80 = scmp.eq.s32.totalorder %s19, 0
      %p81 = por %p79, %p80
      %p82 = scmp.ne.s32.totalorder %s74, %s76
      %p83 = scmp.eq.s32.totalorder %s24, 1
      %p84 = por %p82, %p83
      %p85 = scmp.ne.s32.totalorder %s76, %s77
      %p86 = scmp.eq.s32.totalorder %s24, 0
      %p87 = por %p85, %p86
      %p88 = scmp.ne.s32.totalorder %s76, %s77
      %p89 = scmp.eq.s32.totalorder %s25, 1
      %p90 = por %p88, %p89
      %p92 = scmp.ne.s32.totalorder %s77, %s91
      %p93 = scmp.eq.s32.totalorder %s25, 0
      %p94 = por %p92, %p93
      %s96 = sadd.s32 %s95, 1
      %p99 = scmp.eq.s32.totalorder %s19, 1
      %p100 = scmp.ne.s32.totalorder %s95, %s97
      %p101 = scmp.eq.s32.totalorder %s19, 0
      %p102 = por %p100, %p101
      %p103 = scmp.ne.s32.totalorder %s95, %s97
      %p104 = scmp.eq.s32.totalorder %s24, 1
      %p105 = por %p103, %p104
      %p106 = scmp.ne.s32.totalorder %s97, %s98
      %p107 = scmp.eq.s32.totalorder %s24, 0
      %p108 = por %p106, %p107
      %p109 = scmp.ne.s32.totalorder %s97, %s98
      %p110 = scmp.eq.s32.totalorder %s25, 1
      %p111 = por %p109, %p110
      %p113 = scmp.ne.s32.totalorder %s98, %s112
      %p114 = scmp.eq.s32.totalorder %s25, 0
      %p115 = por %p113, %p114
      %s117 = sadd.s32 %s116, 1
      %p120 = scmp.eq.s32.totalorder %s19, 1
      %p121 = scmp.ne.s32.totalorder %s116, %s118
      %p122 = scmp.eq.s32.totalorder %s19, 0
      %p123 = por %p121, %p122
      %p124 = scmp.ne.s32.totalorder %s116, %s118
      %p125 = scmp.eq.s32.totalorder %s24, 1
      %p126 = por %p124, %p125
      %p127 = scmp.ne.s32.totalorder %s118, %s119
      %p128 = scmp.eq.s32.totalorder %s24, 0
      %p129 = por %p127, %p128
      %p130 = scmp.ne.s32.totalorder %s118, %s119
      %p131 = scmp.eq.s32.totalorder %s25, 1
      %p132 = por %p130, %p131
      %p134 = scmp.ne.s32.totalorder %s119, %s133
      %p135 = scmp.eq.s32.totalorder %s25, 0
      %p136 = por %p134, %p135
      %s138 = sadd.s32 %s137, 1
      %p141 = scmp.eq.s32.totalorder %s19, 1
      %p142 = scmp.ne.s32.totalorder %s137, %s139
      %p143 = scmp.eq.s32.totalorder %s19, 0
      %p144 = por %p142, %p143
      %p145 = scmp.ne.s32.totalorder %s137, %s139
      %p146 = scmp.eq.s32.totalorder %s24, 1
      %p147 = por %p145, %p146
      %p148 = scmp.ne.s32.totalorder %s139, %s140
      %p149 = scmp.eq.s32.totalorder %s24, 0
      %p150 = por %p148, %p149
      %p151 = scmp.ne.s32.totalorder %s139, %s140
      %p152 = scmp.eq.s32.totalorder %s25, 1
      %p153 = por %p151, %p152
      %p155 = scmp.ne.s32.totalorder %s140, %s154
      %p156 = scmp.eq.s32.totalorder %s25, 0
      %p157 = por %p155, %p156
      %s158 = ssub.s32 %s19, %s26
      %p159 = scmp.eq.s32.totalorder %s158, 0
      %s161 = sadd.s32 %s160, 1
      %s162 = scalar_select %p159, %s160, %s161
      %p165 = pneg %p159
      %p166 = scmp.eq.s32.totalorder %s19, 1
      %p167 = por %p165, %p166
      %p168 = scmp.ne.s32.totalorder %s160, %s163
      %p169 = scmp.eq.s32.totalorder %s19, 0
      %p170 = por %p168, %p169
      %p171 = scmp.ne.s32.totalorder %s160, %s163
      %p172 = scmp.eq.s32.totalorder %s24, 1
      %p173 = por %p171, %p172
      %p174 = scmp.ne.s32.totalorder %s163, %s164
      %p175 = scmp.eq.s32.totalorder %s24, 0
      %p176 = por %p174, %p175
      %p177 = scmp.ne.s32.totalorder %s163, %s164
      %p178 = scmp.eq.s32.totalorder %s25, 1
      %p179 = por %p177, %p178
      %p181 = scmp.ne.s32.totalorder %s164, %s180
      %p182 = scmp.eq.s32.totalorder %s25, 0
      %p183 = por %p181, %p182
      %p184 = scmp.le.s32.totalorder 1, %s19
      %p185 = scmp.lt.s32.totalorder %s19, 3
      %p186 = pnand %p184, %p185
      %p187 = pneg %p186
      // Predicated region
      $region9: #{tpu_custom_call.1} parent=5 // pred_check
        _
      $region10: #{tpu_custom_call.1} parent=5 // pred_check_branch
        %189 = sbr.rel (%p186) target = $region12
      $region11: #{tpu_custom_call.1} parent=5 // pred_region
        %s190 = ssub.s32 %s19, 1
        // Predicated region
        $region13: #{tpu_custom_call.1} parent=11 // pred_check
          %p191 = pneg %p66
        $region14: #{tpu_custom_call.1} parent=11 // pred_check_branch
          %193 = sbr.rel (%p191) target = $region16
        $region15: #{tpu_custom_call.1} parent=11 // pred_region
          %195 = vsyncadd [#allocation10], 0
          %s196 = sshll.u32 %s1, 4
          %s197 = int_to_ptr.hbm [resolvable:$true] %s196
          %s198 = sshll.u32 [#allocation9], 4
          %s199 = int_to_ptr.vmem [resolvable:$true] %s198
          %204 = dma.hbm_to_vmem [thread:$0]  %s197, 256, %s199, [#allocation10], 128, 128, 8
        $region16: #{tpu_custom_call.1} parent=11 // pred_fallthru
          _
        // Predicated region
        $region17: #{tpu_custom_call.1} parent=11 // pred_check
          %p205 = pneg %p87
        $region18: #{tpu_custom_call.1} parent=11 // pred_check_branch
          %207 = sbr.rel (%p205) target = $region20
        $region19: #{tpu_custom_call.1} parent=11 // pred_region
          _
        $region20: #{tpu_custom_call.1} parent=11 // pred_fallthru
          _
        // Predicated region
        $region21: #{tpu_custom_call.1} parent=11 // pred_check
          %p208 = pneg %p108
        $region22: #{tpu_custom_call.1} parent=11 // pred_check_branch
          %210 = sbr.rel (%p208) target = $region24
        $region23: #{tpu_custom_call.1} parent=11 // pred_region
          _
        $region24: #{tpu_custom_call.1} parent=11 // pred_fallthru
          _
        // Predicated region
        $region25: #{tpu_custom_call.1} parent=11 // pred_check
          %p211 = pneg %p129
        $region26: #{tpu_custom_call.1} parent=11 // pred_check_branch
          %213 = sbr.rel (%p211) target = $region28
        $region27: #{tpu_custom_call.1} parent=11 // pred_region
          %215 = vsyncadd [#allocation10], 0
          %s217 = sshll.u32 %s4, 4
          %s218 = int_to_ptr.hbm [resolvable:$true] %s217
          %s219 = sshll.u32 [#allocation11], 4
          %s220 = int_to_ptr.vmem [resolvable:$true] %s219
          %222 = dma.hbm_to_vmem [thread:$0]  %s218, 384, %s220, [#allocation10]
        $region28: #{tpu_custom_call.1} parent=11 // pred_fallthru
          _
        // Predicated region
        $region29: #{tpu_custom_call.1} parent=11 // pred_check
          %p223 = pneg %p150
        $region30: #{tpu_custom_call.1} parent=11 // pred_check_branch
          %225 = sbr.rel (%p223) target = $region32
        $region31: #{tpu_custom_call.1} parent=11 // pred_region
          _
        $region32: #{tpu_custom_call.1} parent=11 // pred_fallthru
          _
      $region12: #{tpu_custom_call.1} parent=5 // pred_fallthru
        _
      %p226 = scmp.lt.s32.totalorder %s19, 2
      // Predicated region
      $region33: #{tpu_custom_call.1} parent=5 // pred_check
        %p227 = pneg %p226
      $region34: #{tpu_custom_call.1} parent=5 // pred_check_branch
        %229 = sbr.rel (%p227) target = $region36
      $region35: #{tpu_custom_call.1} parent=5 // pred_region
        // Predicated region
        $region37: #{tpu_custom_call.1} parent=35 // pred_check
          %p230 = pneg %p39
        $region38: #{tpu_custom_call.1} parent=35 // pred_check_branch
          %232 = sbr.rel (%p230) target = $region40
        $region39: #{tpu_custom_call.1} parent=35 // pred_region
          %s233 = sand.u32 %s29, 1
          %s234 = scalar_lea.sflag [#allocation7], %s233
          %s235 = sand.u32 %s29, 1
          %s236 = smul.addr %s235, 16
          %s237 = scalar_lea.vmem [#allocation6], %s236
          %239 = vsyncadd %s234, 0
          %s240 = smul.addr %s19, 4
          %s241 = smul.addr %s240, 4
          %s242 = scalar_lea.hbm %s0, %s241
          %s243 = sshll.u32 %s242, 4
          %s244 = int_to_ptr.hbm [resolvable:$true] %s243
          %s245 = sshll.u32 %s237, 4
          %s246 = int_to_ptr.vmem [resolvable:$true] %s245
          %251 = dma.hbm_to_vmem [thread:$0]  %s244, 256, %s246, %s234, 64, 64, 4
        $region40: #{tpu_custom_call.1} parent=35 // pred_fallthru
          _
      $region36: #{tpu_custom_call.1} parent=5 // pred_fallthru
        _
      %p252 = scmp.le.s32.totalorder 1, %s19
      %p253 = scmp.lt.s32.totalorder %s19, 3
      %p254 = pnand %p252, %p253
      %p255 = pneg %p254
      // Predicated region
      $region41: #{tpu_custom_call.1} parent=5 // pred_check
        _
      $region42: #{tpu_custom_call.1} parent=5 // pred_check_branch
        %257 = sbr.rel (%p254) target = $region44
      $region43: #{tpu_custom_call.1} parent=5 // pred_region
        %s258 = ssub.s32 %s19, 1
        %s259 = sand.u32 %s32, 1
        %s260 = scalar_lea.sflag [#allocation7], %s259
        %s261 = sand.u32 %s32, 1
        %s262 = smul.addr %s261, 16
        %s263 = scalar_lea.vmem [#allocation6], %s262
        // Predicated region
        $region45: #{tpu_custom_call.1} parent=43 // pred_check
          %p264 = pneg %p45
        $region46: #{tpu_custom_call.1} parent=43 // pred_check_branch
          %266 = sbr.rel (%p264) target = $region48
        $region47: #{tpu_custom_call.1} parent=43 // pred_region
          %268 = dma.done %s260, 256
        $region48: #{tpu_custom_call.1} parent=43 // pred_fallthru
          _
        // Predicated region
        $region49: #{tpu_custom_call.1} parent=43 // pred_check
          %p269 = pneg %p66
        $region50: #{tpu_custom_call.1} parent=43 // pred_check_branch
          %271 = sbr.rel (%p269) target = $region52
        $region51: #{tpu_custom_call.1} parent=43 // pred_region
          %273 = dma.done [#allocation10], 256
        $region52: #{tpu_custom_call.1} parent=43 // pred_fallthru
          _
        // Predicated region
        $region53: #{tpu_custom_call.1} parent=43 // pred_check
          %p274 = pneg %p129
        $region54: #{tpu_custom_call.1} parent=43 // pred_check_branch
          %276 = sbr.rel (%p274) target = $region56
        $region55: #{tpu_custom_call.1} parent=43 // pred_region
          %278 = dma.done [#allocation10], 384
        $region56: #{tpu_custom_call.1} parent=43 // pred_fallthru
          _
        %s279 = sand.u32 %s32, 1
        %s280 = scalar_lea.sflag [#allocation7], %s279
        %s281 = sand.u32 %s32, 1
        %s282 = smul.addr %s281, 16
        %s283 = scalar_lea.vmem [#allocation6], %s282
        %p284 = pneg %p45
        %p285 = pneg %p42
        %p286 = pneg %p66
        %p287 = pneg %p63
        %p288 = pneg %p87
        %p289 = pneg %p84
        %p290 = pneg %p108
        %p291 = pneg %p105
        %p292 = pneg %p129
        %p293 = pneg %p126
        %p294 = pneg %p150
        %p295 = pneg %p147
        %p296 = pneg %p176
        %p297 = pneg %p173
        %s298 = sand.u32 %s163, 1
        %s299 = scalar_lea.sflag [#allocation8], %s298
        %s300 = sand.u32 %s163, 1
        %s301 = smul.addr %s300, 8
        %s302 = scalar_lea.vmem [#allocation12], %s301
        %v303 = vld [vmem:[#allocation9] sm:$0xff]
        %v304 = vld [vmem:[#allocation9 + $0x8] sm:$0x1]
        %v305 = vld [vmem:[%s263] sm:$0xf]
        %v306 = vld [vmem:[%s263 + $0x4] sm:$0xf]
        %v307 = vld [vmem:[%s263 + $0x8] sm:$0xf]
        %v308 = vld [vmem:[%s263 + $0xc] sm:$0xf]
        %vm309 = vcmask 519168
        %v310 = vsel %vm309, %v305, -inf
        %v311 = vsel %vm309, %v306, -inf
        %v312 = vsel %vm309, %v307, -inf
        %v313 = vsel %vm309, %v308, -inf
        %v314 = vmax.f32 %v310, %v311
        %v315 = vmax.f32 %v312, %v313
        %v316 = vmax.f32 %v314, %v315
        %v317 = vld [vmem:[%s2] sm:$0xff]
        %v318 = vld [vmem:[%s2 + $0x8] sm:$0xf]
        %v319 = vld [vmem:[%s3] sm:$0xf]
        %vm320 = vcmask 670720
        %321 = vst.msk [vmem:[#allocation2] sm:$0xff] %vm320, 0.0
        %322 = vst.msk [vmem:[#allocation2 + $0x8] sm:$0xff] %vm320, 0.0
        %323 = vst.msk [vmem:[#allocation2 + $0x10] sm:$0xff] %vm320, 0.0
        %324 = vst.msk [vmem:[#allocation2 + $0x18] sm:$0xff] %vm320, 0.0
        %vm325 = vcmask 666624
        %326 = vst.msk [vmem:[#allocation2 + $0x20] sm:$0xf] %vm325, 0.0
        %v327 = vxor.u32 %v316, 2147483648
        %v328 = vmul.f32 %v327, 1.442695
        %v329 = vpow.pop %v328
        %v330 = vadd.f32 %v329, 1.0
        %v331 = vrcp.pop %v330
        %v332 = vmul.f32 %v330, %v331
        %v333 = vsub.f32 1.0, %v332
        %v334 = vmul.f32 %v331, %v333
        %v335 = vadd.f32 %v331, %v334
        %vm336 = vweird.f32 %v330
        %vm337 = vweird.f32 %v331
        %vm338 = vmor %vm336, %vm337
        %v339 = vsel %vm338, %v331, %v335
        %v340 = vand.u32 2147483647, %v330
        %vm341 = vcmp.eq.f32.partialorder %v340, 8.507059e+37
        %v342 = vand.u32 %v330, 2147483648
        %v343 = vor.u32 1.1754944e-38, %v342
        %v344 = vsel %vm341, %v343, %v339
        %v345 = vmul.f32 1.0, %v344
        %v346 = vmul.f32 %v316, %v345
        %348 = vrot.lane.b32.xlu0 %v346, 9
        %v349 = vpop.permute.xlu0 %348
        %vm351 = vcmask 592968
        %352 = vst.msk [vmem:[#allocation2] sm:$0xf] %vm351, %v349
        %v353 = vsub.f32 %v316, -2.0
        %v354 = vmul.f32 %v353, 1.75
        %v355 = vmul.f32 %v354, %v354
        %v356 = vsub.f32 0.0, %v355
        %v357 = vmul.f32 %v356, 1.442695
        %v358 = vpow.pop %v357
        %360 = vrot.lane.b32.xlu0 %v358, 9
        %v361 = vpop.permute.xlu0 %360
        %363 = vst.msk [vmem:[#allocation2 + $0x4] sm:$0xf] %vm351, %v361
        %v364 = vsub.f32 %v316, -1.4285715
        %v365 = vmul.f32 %v364, 1.75
        %v366 = vmul.f32 %v365, %v365
        %v367 = vsub.f32 0.0, %v366
        %v368 = vmul.f32 %v367, 1.442695
        %v369 = vpow.pop %v368
        %371 = vrot.lane.b32.xlu0 %v369, 9
        %v372 = vpop.permute.xlu0 %371
        %374 = vst.msk [vmem:[#allocation2 + $0x8] sm:$0xf] %vm351, %v372
        %v375 = vsub.f32 %v316, -0.85714287
        %v376 = vmul.f32 %v375, 1.75
        %v377 = vmul.f32 %v376, %v376
        %v378 = vsub.f32 0.0, %v377
        %v379 = vmul.f32 %v378, 1.442695
        %v380 = vpow.pop %v379
        %382 = vrot.lane.b32.xlu0 %v380, 9
        %v383 = vpop.permute.xlu0 %382
        %385 = vst.msk [vmem:[#allocation2 + $0xc] sm:$0xf] %vm351, %v383
        %v386 = vsub.f32 %v316, -0.2857143
        %v387 = vmul.f32 %v386, 1.75
        %v388 = vmul.f32 %v387, %v387
        %v389 = vsub.f32 0.0, %v388
        %v390 = vmul.f32 %v389, 1.442695
        %v391 = vpow.pop %v390
        %393 = vrot.lane.b32.xlu0 %v391, 9
        %v394 = vpop.permute.xlu0 %393
        %396 = vst.msk [vmem:[#allocation2 + $0x10] sm:$0xf] %vm351, %v394
        %v397 = vsub.f32 %v316, 0.2857143
        %v398 = vmul.f32 %v397, 1.75
        %v399 = vmul.f32 %v398, %v398
        %v400 = vsub.f32 0.0, %v399
        %v401 = vmul.f32 %v400, 1.442695
        %v402 = vpow.pop %v401
        %404 = vrot.lane.b32.xlu0 %v402, 9
        %v405 = vpop.permute.xlu0 %404
        %407 = vst.msk [vmem:[#allocation2 + $0x14] sm:$0xf] %vm351, %v405
        %v408 = vsub.f32 %v316, 0.85714287
        %v409 = vmul.f32 %v408, 1.75
        %v410 = vmul.f32 %v409, %v409
        %v411 = vsub.f32 0.0, %v410
        %v412 = vmul.f32 %v411, 1.442695
        %v413 = vpow.pop %v412
        %415 = vrot.lane.b32.xlu0 %v413, 9
        %v416 = vpop.permute.xlu0 %415
        %418 = vst.msk [vmem:[#allocation2 + $0x18] sm:$0xf] %vm351, %v416
        %v419 = vsub.f32 %v316, 1.4285715
        %v420 = vmul.f32 %v419, 1.75
        %v421 = vmul.f32 %v420, %v420
        %v422 = vsub.f32 0.0, %v421
        %v423 = vmul.f32 %v422, 1.442695
        %v424 = vpow.pop %v423
        %426 = vrot.lane.b32.xlu0 %v424, 9
        %v427 = vpop.permute.xlu0 %426
        %429 = vst.msk [vmem:[#allocation2 + $0x1c] sm:$0xf] %vm351, %v427
        %v430 = vsub.f32 %v316, 2.0
        %v431 = vmul.f32 %v430, 1.75
        %v432 = vmul.f32 %v431, %v431
        %v433 = vsub.f32 0.0, %v432
        %v434 = vmul.f32 %v433, 1.442695
        %v435 = vpow.pop %v434
        %437 = vrot.lane.b32.xlu0 %v435, 9
        %v438 = vpop.permute.xlu0 %437
        %440 = vst.msk [vmem:[#allocation2 + $0x20] sm:$0xf] %vm351, %v438
        %v441 = vld [vmem:[#allocation2] sm:$0xff]
        %v442 = vld [vmem:[#allocation2 + $0x8] sm:$0xff]
        %v443 = vld [vmem:[#allocation2 + $0x10] sm:$0xff]
        %v444 = vld [vmem:[#allocation2 + $0x18] sm:$0xff]
        %v445 = vld [vmem:[#allocation2 + $0x20] sm:$0xf]
        %v446 = vperm.slane %v303, 0
        %v447 = vmul.f32 %v441, %v446
        %v448 = vmul.f32 %v442, %v446
        %v449 = vmul.f32 %v443, %v446
        %v450 = vmul.f32 %v444, %v446
        %v451 = vmul.f32 %v445, %v446
        %vm452 = vcmask 523264
        %453 = vst.msk [vmem:[#allocation3] sm:$0xff] %vm452, %v447
        %454 = vst.msk [vmem:[#allocation3 + $0x8] sm:$0xff] %vm452, %v448
        %455 = vst.msk [vmem:[#allocation3 + $0x10] sm:$0xff] %vm452, %v449
        %456 = vst.msk [vmem:[#allocation3 + $0x18] sm:$0xff] %vm452, %v450
        %457 = vst.msk [vmem:[#allocation3 + $0x20] sm:$0xf] %vm309, %v451
        %v458 = vld [vmem:[#allocation2] sm:$0xff]
        %v459 = vld [vmem:[#allocation2 + $0x8] sm:$0xff]
        %v460 = vld [vmem:[#allocation2 + $0x10] sm:$0xff]
        %v461 = vld [vmem:[#allocation2 + $0x18] sm:$0xff]
        %v462 = vld [vmem:[#allocation2 + $0x20] sm:$0xf]
        %v463 = vperm.slane %v303, 1
        %465 = vrot.lane.b32.xlu0 %v463, 1
        %v466 = vpop.permute.xlu0 %465
        %v468 = vmul.f32 %v458, %v466
        %v469 = vmul.f32 %v459, %v466
        %v470 = vmul.f32 %v460, %v466
        %v471 = vmul.f32 %v461, %v466
        %v472 = vmul.f32 %v462, %v466
        %478 = vrot.lane.b32.xlu0 %v468, 127
        %v479 = vpop.permute.xlu0 %478
        %480 = vrot.lane.b32.xlu0 %v469, 127
        %v481 = vpop.permute.xlu0 %480
        %482 = vrot.lane.b32.xlu0 %v470, 127
        %v483 = vpop.permute.xlu0 %482
        %484 = vrot.lane.b32.xlu0 %v471, 127
        %v485 = vpop.permute.xlu0 %484
        %486 = vrot.lane.b32.xlu0 %v472, 127
        %v487 = vpop.permute.xlu0 %486
        %493 = vst.msk [vmem:[#allocation3 + $0x24] sm:$0xff] %vm452, %v479
        %494 = vst.msk [vmem:[#allocation3 + $0x2c] sm:$0xff] %vm452, %v481
        %495 = vst.msk [vmem:[#allocation3 + $0x34] sm:$0xff] %vm452, %v483
        %496 = vst.msk [vmem:[#allocation3 + $0x3c] sm:$0xff] %vm452, %v485
        %497 = vst.msk [vmem:[#allocation3 + $0x44] sm:$0xf] %vm309, %v487
        %v498 = vld [vmem:[#allocation2] sm:$0xff]
        %v499 = vld [vmem:[#allocation2 + $0x8] sm:$0xff]
        %v500 = vld [vmem:[#allocation2 + $0x10] sm:$0xff]
        %v501 = vld [vmem:[#allocation2 + $0x18] sm:$0xff]
        %v502 = vld [vmem:[#allocation2 + $0x20] sm:$0xf]
        %v503 = vperm.slane %v303, 2
        %505 = vrot.lane.b32.xlu0 %v503, 2
        %v506 = vpop.permute.xlu0 %505
        %v508 = vmul.f32 %v498, %v506
        %v509 = vmul.f32 %v499, %v506
        %v510 = vmul.f32 %v500, %v506
        %v511 = vmul.f32 %v501, %v506
        %v512 = vmul.f32 %v502, %v506
        %518 = vrot.lane.b32.xlu0 %v508, 126
        %v519 = vpop.permute.xlu0 %518
        %520 = vrot.lane.b32.xlu0 %v509, 126
        %v521 = vpop.permute.xlu0 %520
        %522 = vrot.lane.b32.xlu0 %v510, 126
        %v523 = vpop.permute.xlu0 %522
        %524 = vrot.lane.b32.xlu0 %v511, 126
        %v525 = vpop.permute.xlu0 %524
        %526 = vrot.lane.b32.xlu0 %v512, 126
        %v527 = vpop.permute.xlu0 %526
        %533 = vst.msk [vmem:[#allocation3 + $0x48] sm:$0xff] %vm452, %v519
        %534 = vst.msk [vmem:[#allocation3 + $0x50] sm:$0xff] %vm452, %v521
        %535 = vst.msk [vmem:[#allocation3 + $0x58] sm:$0xff] %vm452, %v523
        %536 = vst.msk [vmem:[#allocation3 + $0x60] sm:$0xff] %vm452, %v525
        %537 = vst.msk [vmem:[#allocation3 + $0x68] sm:$0xf] %vm309, %v527
        %v538 = vld [vmem:[#allocation2] sm:$0xff]
        %v539 = vld [vmem:[#allocation2 + $0x8] sm:$0xff]
        %v540 = vld [vmem:[#allocation2 + $0x10] sm:$0xff]
        %v541 = vld [vmem:[#allocation2 + $0x18] sm:$0xff]
        %v542 = vld [vmem:[#allocation2 + $0x20] sm:$0xf]
        %v543 = vperm.slane %v303, 3
        %545 = vrot.lane.b32.xlu0 %v543, 8
        %v546 = vpop.permute.xlu0 %545
        %v548 = vmul.f32 %v538, %v546
        %v549 = vmul.f32 %v539, %v546
        %v550 = vmul.f32 %v540, %v546
        %v551 = vmul.f32 %v541, %v546
        %v552 = vmul.f32 %v542, %v546
        %558 = vrot.lane.b32.xlu0 %v548, 120
        %v559 = vpop.permute.xlu0 %558
        %560 = vrot.lane.b32.xlu0 %v549, 120
        %v561 = vpop.permute.xlu0 %560
        %562 = vrot.lane.b32.xlu0 %v550, 120
        %v563 = vpop.permute.xlu0 %562
        %564 = vrot.lane.b32.xlu0 %v551, 120
        %v565 = vpop.permute.xlu0 %564
        %566 = vrot.lane.b32.xlu0 %v552, 120
        %v567 = vpop.permute.xlu0 %566
        %573 = vst.msk [vmem:[#allocation3 + $0x6c] sm:$0xff] %vm452, %v559
        %574 = vst.msk [vmem:[#allocation3 + $0x74] sm:$0xff] %vm452, %v561
        %575 = vst.msk [vmem:[#allocation3 + $0x7c] sm:$0xff] %vm452, %v563
        %576 = vst.msk [vmem:[#allocation3 + $0x84] sm:$0xff] %vm452, %v565
        %577 = vst.msk [vmem:[#allocation3 + $0x8c] sm:$0xf] %vm309, %v567
        %v578 = vld [vmem:[#allocation2] sm:$0xff]
        %v579 = vld [vmem:[#allocation2 + $0x8] sm:$0xff]
        %v580 = vld [vmem:[#allocation2 + $0x10] sm:$0xff]
        %v581 = vld [vmem:[#allocation2 + $0x18] sm:$0xff]
        %v582 = vld [vmem:[#allocation2 + $0x20] sm:$0xf]
        %v583 = vperm.slane %v303, 4
        %585 = vrot.lane.b32.xlu0 %v583, 9
        %v586 = vpop.permute.xlu0 %585
        %v588 = vmul.f32 %v578, %v586
        %v589 = vmul.f32 %v579, %v586
        %v590 = vmul.f32 %v580, %v586
        %v591 = vmul.f32 %v581, %v586
        %v592 = vmul.f32 %v582, %v586
        %598 = vrot.lane.b32.xlu0 %v588, 119
        %v599 = vpop.permute.xlu0 %598
        %600 = vrot.lane.b32.xlu0 %v589, 119
        %v601 = vpop.permute.xlu0 %600
        %602 = vrot.lane.b32.xlu0 %v590, 119
        %v603 = vpop.permute.xlu0 %602
        %604 = vrot.lane.b32.xlu0 %v591, 119
        %v605 = vpop.permute.xlu0 %604
        %606 = vrot.lane.b32.xlu0 %v592, 119
        %v607 = vpop.permute.xlu0 %606
        %613 = vst.msk [vmem:[#allocation3 + $0x90] sm:$0xff] %vm452, %v599
        %614 = vst.msk [vmem:[#allocation3 + $0x98] sm:$0xff] %vm452, %v601
        %615 = vst.msk [vmem:[#allocation3 + $0xa0] sm:$0xff] %vm452, %v603
        %616 = vst.msk [vmem:[#allocation3 + $0xa8] sm:$0xff] %vm452, %v605
        %617 = vst.msk [vmem:[#allocation3 + $0xb0] sm:$0xf] %vm309, %v607
        %v618 = vld [vmem:[#allocation2] sm:$0xff]
        %v619 = vld [vmem:[#allocation2 + $0x8] sm:$0xff]
        %v620 = vld [vmem:[#allocation2 + $0x10] sm:$0xff]
        %v621 = vld [vmem:[#allocation2 + $0x18] sm:$0xff]
        %v622 = vld [vmem:[#allocation2 + $0x20] sm:$0xf]
        %v623 = vperm.slane %v303, 5
        %625 = vrot.lane.b32.xlu0 %v623, 10
        %v626 = vpop.permute.xlu0 %625
        %v628 = vmul.f32 %v618, %v626
        %v629 = vmul.f32 %v619, %v626
        %v630 = vmul.f32 %v620, %v626
        %v631 = vmul.f32 %v621, %v626
        %v632 = vmul.f32 %v622, %v626
        %638 = vrot.lane.b32.xlu0 %v628, 118
        %v639 = vpop.permute.xlu0 %638
        %640 = vrot.lane.b32.xlu0 %v629, 118
        %v641 = vpop.permute.xlu0 %640
        %642 = vrot.lane.b32.xlu0 %v630, 118
        %v643 = vpop.permute.xlu0 %642
        %644 = vrot.lane.b32.xlu0 %v631, 118
        %v645 = vpop.permute.xlu0 %644
        %646 = vrot.lane.b32.xlu0 %v632, 118
        %v647 = vpop.permute.xlu0 %646
        %653 = vst.msk [vmem:[#allocation3 + $0xb4] sm:$0xff] %vm452, %v639
        %654 = vst.msk [vmem:[#allocation3 + $0xbc] sm:$0xff] %vm452, %v641
        %655 = vst.msk [vmem:[#allocation3 + $0xc4] sm:$0xff] %vm452, %v643
        %656 = vst.msk [vmem:[#allocation3 + $0xcc] sm:$0xff] %vm452, %v645
        %657 = vst.msk [vmem:[#allocation3 + $0xd4] sm:$0xf] %vm309, %v647
        %v658 = vld [vmem:[#allocation2] sm:$0xff]
        %v659 = vld [vmem:[#allocation2 + $0x8] sm:$0xff]
        %v660 = vld [vmem:[#allocation2 + $0x10] sm:$0xff]
        %v661 = vld [vmem:[#allocation2 + $0x18] sm:$0xff]
        %v662 = vld [vmem:[#allocation2 + $0x20] sm:$0xf]
        %v663 = vperm.slane %v303, 6
        %665 = vrot.lane.b32.xlu0 %v663, 16
        %v666 = vpop.permute.xlu0 %665
        %v668 = vmul.f32 %v658, %v666
        %v669 = vmul.f32 %v659, %v666
        %v670 = vmul.f32 %v660, %v666
        %v671 = vmul.f32 %v661, %v666
        %v672 = vmul.f32 %v662, %v666
        %678 = vrot.lane.b32.xlu0 %v668, 112
        %v679 = vpop.permute.xlu0 %678
        %680 = vrot.lane.b32.xlu0 %v669, 112
        %v681 = vpop.permute.xlu0 %680
        %682 = vrot.lane.b32.xlu0 %v670, 112
        %v683 = vpop.permute.xlu0 %682
        %684 = vrot.lane.b32.xlu0 %v671, 112
        %v685 = vpop.permute.xlu0 %684
        %686 = vrot.lane.b32.xlu0 %v672, 112
        %v687 = vpop.permute.xlu0 %686
        %693 = vst.msk [vmem:[#allocation3 + $0xd8] sm:$0xff] %vm452, %v679
        %694 = vst.msk [vmem:[#allocation3 + $0xe0] sm:$0xff] %vm452, %v681
        %695 = vst.msk [vmem:[#allocation3 + $0xe8] sm:$0xff] %vm452, %v683
        %696 = vst.msk [vmem:[#allocation3 + $0xf0] sm:$0xff] %vm452, %v685
        %697 = vst.msk [vmem:[#allocation3 + $0xf8] sm:$0xf] %vm309, %v687
        %v698 = vld [vmem:[#allocation2] sm:$0xff]
        %v699 = vld [vmem:[#allocation2 + $0x8] sm:$0xff]
        %v700 = vld [vmem:[#allocation2 + $0x10] sm:$0xff]
        %v701 = vld [vmem:[#allocation2 + $0x18] sm:$0xff]
        %v702 = vld [vmem:[#allocation2 + $0x20] sm:$0xf]
        %v703 = vperm.slane %v303, 7
        %705 = vrot.lane.b32.xlu0 %v703, 17
        %v706 = vpop.permute.xlu0 %705
        %v708 = vmul.f32 %v698, %v706
        %v709 = vmul.f32 %v699, %v706
        %v710 = vmul.f32 %v700, %v706
        %v711 = vmul.f32 %v701, %v706
        %v712 = vmul.f32 %v702, %v706
        %718 = vrot.lane.b32.xlu0 %v708, 111
        %v719 = vpop.permute.xlu0 %718
        %720 = vrot.lane.b32.xlu0 %v709, 111
        %v721 = vpop.permute.xlu0 %720
        %722 = vrot.lane.b32.xlu0 %v710, 111
        %v723 = vpop.permute.xlu0 %722
        %724 = vrot.lane.b32.xlu0 %v711, 111
        %v725 = vpop.permute.xlu0 %724
        %726 = vrot.lane.b32.xlu0 %v712, 111
        %v727 = vpop.permute.xlu0 %726
        %733 = vst.msk [vmem:[#allocation3 + $0xfc] sm:$0xff] %vm452, %v719
        %734 = vst.msk [vmem:[#allocation3 + $0x104] sm:$0xff] %vm452, %v721
        %735 = vst.msk [vmem:[#allocation3 + $0x10c] sm:$0xff] %vm452, %v723
        %736 = vst.msk [vmem:[#allocation3 + $0x114] sm:$0xff] %vm452, %v725
        %737 = vst.msk [vmem:[#allocation3 + $0x11c] sm:$0xf] %vm309, %v727
        %v738 = vld [vmem:[#allocation2] sm:$0xff]
        %v739 = vld [vmem:[#allocation2 + $0x8] sm:$0xff]
        %v740 = vld [vmem:[#allocation2 + $0x10] sm:$0xff]
        %v741 = vld [vmem:[#allocation2 + $0x18] sm:$0xff]
        %v742 = vld [vmem:[#allocation2 + $0x20] sm:$0xf]
        %v743 = vperm.slane %v304, 0
        %745 = vrot.lane.b32.xlu0 %v743, 18
        %v746 = vpop.permute.xlu0 %745
        %v748 = vmul.f32 %v738, %v746
        %v749 = vmul.f32 %v739, %v746
        %v750 = vmul.f32 %v740, %v746
        %v751 = vmul.f32 %v741, %v746
        %v752 = vmul.f32 %v742, %v746
        %758 = vrot.lane.b32.xlu0 %v748, 110
        %v759 = vpop.permute.xlu0 %758
        %760 = vrot.lane.b32.xlu0 %v749, 110
        %v761 = vpop.permute.xlu0 %760
        %762 = vrot.lane.b32.xlu0 %v750, 110
        %v763 = vpop.permute.xlu0 %762
        %764 = vrot.lane.b32.xlu0 %v751, 110
        %v765 = vpop.permute.xlu0 %764
        %766 = vrot.lane.b32.xlu0 %v752, 110
        %v767 = vpop.permute.xlu0 %766
        %773 = vst.msk [vmem:[#allocation3 + $0x120] sm:$0xff] %vm452, %v759
        %774 = vst.msk [vmem:[#allocation3 + $0x128] sm:$0xff] %vm452, %v761
        %775 = vst.msk [vmem:[#allocation3 + $0x130] sm:$0xff] %vm452, %v763
        %776 = vst.msk [vmem:[#allocation3 + $0x138] sm:$0xff] %vm452, %v765
        %777 = vst.msk [vmem:[#allocation3 + $0x140] sm:$0xf] %vm309, %v767
        %v778 = vld [vmem:[#allocation3] sm:$0xff]
        %v779 = vld [vmem:[#allocation3 + $0x8] sm:$0xff]
        %v780 = vld [vmem:[#allocation3 + $0x10] sm:$0xff]
        %v781 = vld [vmem:[#allocation3 + $0x18] sm:$0xff]
        %v782 = vld [vmem:[#allocation3 + $0x20] sm:$0xff]
        %v783 = vld [vmem:[#allocation3 + $0x28] sm:$0xff]
        %v784 = vld [vmem:[#allocation3 + $0x30] sm:$0xff]
        %v785 = vld [vmem:[#allocation3 + $0x38] sm:$0xff]
        %v786 = vld [vmem:[#allocation3 + $0x40] sm:$0xff]
        %v787 = vld [vmem:[#allocation3 + $0x48] sm:$0xff]
        %v788 = vld [vmem:[#allocation3 + $0x50] sm:$0xff]
        %v789 = vld [vmem:[#allocation3 + $0x58] sm:$0xff]
        %v790 = vld [vmem:[#allocation3 + $0x60] sm:$0xff]
        %v791 = vld [vmem:[#allocation3 + $0x68] sm:$0xff]
        %v792 = vld [vmem:[#allocation3 + $0x70] sm:$0xff]
        %v793 = vld [vmem:[#allocation3 + $0x78] sm:$0xff]
        %v794 = vld [vmem:[#allocation3 + $0x80] sm:$0xff]
        %v795 = vld [vmem:[#allocation3 + $0x88] sm:$0xff]
        %v796 = vld [vmem:[#allocation3 + $0x90] sm:$0xff]
        %v797 = vld [vmem:[#allocation3 + $0x98] sm:$0xff]
        %v798 = vld [vmem:[#allocation3 + $0xa0] sm:$0xff]
        %v799 = vld [vmem:[#allocation3 + $0xa8] sm:$0xff]
        %v800 = vld [vmem:[#allocation3 + $0xb0] sm:$0xff]
        %v801 = vld [vmem:[#allocation3 + $0xb8] sm:$0xff]
        %v802 = vld [vmem:[#allocation3 + $0xc0] sm:$0xff]
        %v803 = vld [vmem:[#allocation3 + $0xc8] sm:$0xff]
        %v804 = vld [vmem:[#allocation3 + $0xd0] sm:$0xff]
        %v805 = vld [vmem:[#allocation3 + $0xd8] sm:$0xff]
        %v806 = vld [vmem:[#allocation3 + $0xe0] sm:$0xff]
        %v807 = vld [vmem:[#allocation3 + $0xe8] sm:$0xff]
        %v808 = vld [vmem:[#allocation3 + $0xf0] sm:$0xff]
        %v809 = vld [vmem:[#allocation3 + $0xf8] sm:$0xff]
        %v810 = vld [vmem:[#allocation3 + $0x100] sm:$0xff]
        %v811 = vld [vmem:[#allocation3 + $0x108] sm:$0xff]
        %v812 = vld [vmem:[#allocation3 + $0x110] sm:$0xff]
        %v813 = vld [vmem:[#allocation3 + $0x118] sm:$0xff]
        %v814 = vld [vmem:[#allocation3 + $0x120] sm:$0xff]
        %v815 = vld [vmem:[#allocation3 + $0x128] sm:$0xff]
        %v816 = vld [vmem:[#allocation3 + $0x130] sm:$0xff]
        %v817 = vld [vmem:[#allocation3 + $0x138] sm:$0xff]
        %v818 = vld [vmem:[#allocation3 + $0x140] sm:$0xf]
        %820 = vset.pattern.permute.xlu0 0
        %821 = vperm.xlu0 %820, %v319
        %v822 = vpop.permute.xlu0 %821
        %826 = vst [vmem:[#allocation1] ss:$2 sm:$0xff] %v317
        %s827 = scalar_lea.vmem [#allocation1], 16
        %828 = vst [vmem:[%s827] ss:$2 sm:$0xff] %v318
        %v829 = vld.sshfl [vmem:[#allocation1] sm:$0xff pattern:$0x75316420]
        %v830 = vld.sshfl [vmem:[#allocation1 + $0x8] sm:$0xff pattern:$0x75316420]
        %v831 = vld.sshfl [vmem:[#allocation1 + $0x10] sm:$0xff pattern:$0x75316420]
        %vm834 = vcmask 556032
        %v835 = vsel %vm834, %v831, 0
        %vm837 = vcmask 1043456
        %v839 = vsel %vm837, %v818, 0
        %841 = vmatpush.msra.mxu0 %v793
        %842 = vmatpush.msra.mxu0 %v792
        %843 = vmatpush.msra.mxu0 %v791
        %844 = vmatpush.msra.mxu0 %v790
        %845 = vmatpush.msra.mxu0 %v789
        %846 = vmatpush.msra.mxu0 %v788
        %847 = vmatpush.msra.mxu0 %v787
        %848 = vmatpush.msra.mxu0 %v786
        %849 = vmatpush.msra.mxu0 %v785
        %850 = vmatpush.msra.mxu0 %v784
        %851 = vmatpush.msra.mxu0 %v783
        %852 = vmatpush.msra.mxu0 %v782
        %853 = vmatpush.msra.mxu0 %v781
        %854 = vmatpush.msra.mxu0 %v780
        %855 = vmatpush.msra.mxu0 %v779
        %856 = vmatpush.msra.mxu0 %v778
        %857 = vmatmul.f32.gmra.mxu0 %v829
        %v858 = vpop.f32.mrf.mxu0
        %v859 = vadd.f32 %v822, %v858
        %860 = vdwg.mxu0
        %861 = vmatpush.msra.mxu0 %v809
        %862 = vmatpush.msra.mxu0 %v808
        %863 = vmatpush.msra.mxu0 %v807
        %864 = vmatpush.msra.mxu0 %v806
        %865 = vmatpush.msra.mxu0 %v805
        %866 = vmatpush.msra.mxu0 %v804
        %867 = vmatpush.msra.mxu0 %v803
        %868 = vmatpush.msra.mxu0 %v802
        %869 = vmatpush.msra.mxu0 %v801
        %870 = vmatpush.msra.mxu0 %v800
        %871 = vmatpush.msra.mxu0 %v799
        %872 = vmatpush.msra.mxu0 %v798
        %873 = vmatpush.msra.mxu0 %v797
        %874 = vmatpush.msra.mxu0 %v796
        %875 = vmatpush.msra.mxu0 %v795
        %876 = vmatpush.msra.mxu0 %v794
        %877 = vmatmul.f32.gmra.mxu0 %v830
        %v878 = vpop.f32.mrf.mxu0
        %v879 = vadd.f32 %v859, %v878
        %880 = vdwg.mxu0
        %881 = vmatpush.msra.mxu0 0.0
        %882 = vmatpush.msra.mxu0 0.0
        %883 = vmatpush.msra.mxu0 0.0
        %884 = vmatpush.msra.mxu0 0.0
        %885 = vmatpush.msra.mxu0 0.0
        %886 = vmatpush.msra.mxu0 0.0
        %887 = vmatpush.msra.mxu0 0.0
        %888 = vmatpush.msra.mxu0 %v839
        %889 = vmatpush.msra.mxu0 %v817
        %890 = vmatpush.msra.mxu0 %v816
        %891 = vmatpush.msra.mxu0 %v815
        %892 = vmatpush.msra.mxu0 %v814
        %893 = vmatpush.msra.mxu0 %v813
        %894 = vmatpush.msra.mxu0 %v812
        %895 = vmatpush.msra.mxu0 %v811
        %896 = vmatpush.msra.mxu0 %v810
        %897 = vmatmul.f32.gmra.mxu0 %v835
        %v898 = vpop.f32.mrf.mxu0
        %v899 = vadd.f32 %v879, %v898
        %900 = vdwg.mxu0
        %v901 = vmax.f32 %v899, 0.0
        %v902 = vld [vmem:[#allocation11] sm:$0xff]
        %v903 = vld [vmem:[#allocation11 + $0x8] sm:$0xff]
        %v904 = vld [vmem:[#allocation11 + $0x10] sm:$0xff]
        %v905 = vld [vmem:[%s5] sm:$0xff]
        %906 = vst.msk [vmem:[#allocation4] sm:$0xff] %vm320, 0.0
        %907 = vst.msk [vmem:[#allocation4 + $0x8] sm:$0xff] %vm320, 0.0
        %908 = vst.msk [vmem:[#allocation4 + $0x10] sm:$0xff] %vm320, 0.0
        %909 = vst.msk [vmem:[#allocation4 + $0x18] sm:$0xff] %vm320, 0.0
        %910 = vst.msk [vmem:[#allocation4 + $0x20] sm:$0xf] %vm325, 0.0
        %v911 = vxor.u32 %v901, 2147483648
        %v912 = vmul.f32 %v911, 1.442695
        %v913 = vpow.pop %v912
        %v914 = vadd.f32 %v913, 1.0
        %v915 = vrcp.pop %v914
        %v916 = vmul.f32 %v914, %v915
        %v917 = vsub.f32 1.0, %v916
        %v918 = vmul.f32 %v915, %v917
        %v919 = vadd.f32 %v915, %v918
        %vm920 = vweird.f32 %v914
        %vm921 = vweird.f32 %v915
        %vm922 = vmor %vm920, %vm921
        %v923 = vsel %vm922, %v915, %v919
        %v924 = vand.u32 2147483647, %v914
        %vm925 = vcmp.eq.f32.partialorder %v924, 8.507059e+37
        %v926 = vand.u32 %v914, 2147483648
        %v927 = vor.u32 1.1754944e-38, %v926
        %v928 = vsel %vm925, %v927, %v923
        %v929 = vmul.f32 1.0, %v928
        %v930 = vmul.f32 %v901, %v929
        %932 = vrot.lane.b32.xlu0 %v930, 9
        %v933 = vpop.permute.xlu0 %932
        %935 = vst.msk [vmem:[#allocation4] sm:$0xf] %vm351, %v933
        %v936 = vsub.f32 %v901, -2.0
        %v937 = vmul.f32 %v936, 1.75
        %v938 = vmul.f32 %v937, %v937
        %v939 = vsub.f32 0.0, %v938
        %v940 = vmul.f32 %v939, 1.442695
        %v941 = vpow.pop %v940
        %943 = vrot.lane.b32.xlu0 %v941, 9
        %v944 = vpop.permute.xlu0 %943
        %946 = vst.msk [vmem:[#allocation4 + $0x4] sm:$0xf] %vm351, %v944
        %v947 = vsub.f32 %v901, -1.4285715
        %v948 = vmul.f32 %v947, 1.75
        %v949 = vmul.f32 %v948, %v948
        %v950 = vsub.f32 0.0, %v949
        %v951 = vmul.f32 %v950, 1.442695
        %v952 = vpow.pop %v951
        %954 = vrot.lane.b32.xlu0 %v952, 9
        %v955 = vpop.permute.xlu0 %954
        %957 = vst.msk [vmem:[#allocation4 + $0x8] sm:$0xf] %vm351, %v955
        %v958 = vsub.f32 %v901, -0.85714287
        %v959 = vmul.f32 %v958, 1.75
        %v960 = vmul.f32 %v959, %v959
        %v961 = vsub.f32 0.0, %v960
        %v962 = vmul.f32 %v961, 1.442695
        %v963 = vpow.pop %v962
        %965 = vrot.lane.b32.xlu0 %v963, 9
        %v966 = vpop.permute.xlu0 %965
        %968 = vst.msk [vmem:[#allocation4 + $0xc] sm:$0xf] %vm351, %v966
        %v969 = vsub.f32 %v901, -0.2857143
        %v970 = vmul.f32 %v969, 1.75
        %v971 = vmul.f32 %v970, %v970
        %v972 = vsub.f32 0.0, %v971
        %v973 = vmul.f32 %v972, 1.442695
        %v974 = vpow.pop %v973
        %976 = vrot.lane.b32.xlu0 %v974, 9
        %v977 = vpop.permute.xlu0 %976
        %979 = vst.msk [vmem:[#allocation4 + $0x10] sm:$0xf] %vm351, %v977
        %v980 = vsub.f32 %v901, 0.2857143
        %v981 = vmul.f32 %v980, 1.75
        %v982 = vmul.f32 %v981, %v981
        %v983 = vsub.f32 0.0, %v982
        %v984 = vmul.f32 %v983, 1.442695
        %v985 = vpow.pop %v984
        %987 = vrot.lane.b32.xlu0 %v985, 9
        %v988 = vpop.permute.xlu0 %987
        %990 = vst.msk [vmem:[#allocation4 + $0x14] sm:$0xf] %vm351, %v988
        %v991 = vsub.f32 %v901, 0.85714287
        %v992 = vmul.f32 %v991, 1.75
        %v993 = vmul.f32 %v992, %v992
        %v994 = vsub.f32 0.0, %v993
        %v995 = vmul.f32 %v994, 1.442695
        %v996 = vpow.pop %v995
        %998 = vrot.lane.b32.xlu0 %v996, 9
        %v999 = vpop.permute.xlu0 %998
        %1001 = vst.msk [vmem:[#allocation4 + $0x18] sm:$0xf] %vm351, %v999
        %v1002 = vsub.f32 %v901, 1.4285715
        %v1003 = vmul.f32 %v1002, 1.75
        %v1004 = vmul.f32 %v1003, %v1003
        %v1005 = vsub.f32 0.0, %v1004
        %v1006 = vmul.f32 %v1005, 1.442695
        %v1007 = vpow.pop %v1006
        %1009 = vrot.lane.b32.xlu0 %v1007, 9
        %v1010 = vpop.permute.xlu0 %1009
        %1012 = vst.msk [vmem:[#allocation4 + $0x1c] sm:$0xf] %vm351, %v1010
        %v1013 = vsub.f32 %v901, 2.0
        %v1014 = vmul.f32 %v1013, 1.75
        %v1015 = vmul.f32 %v1014, %v1014
        %v1016 = vsub.f32 0.0, %v1015
        %v1017 = vmul.f32 %v1016, 1.442695
        %v1018 = vpow.pop %v1017
        %1020 = vrot.lane.b32.xlu0 %v1018, 9
        %v1021 = vpop.permute.xlu0 %1020
        %1023 = vst.msk [vmem:[#allocation4 + $0x20] sm:$0xf] %vm351, %v1021
        %v1024 = vld [vmem:[#allocation4] sm:$0xff]
        %v1025 = vld [vmem:[#allocation4 + $0x8] sm:$0xff]
        %v1026 = vld [vmem:[#allocation4 + $0x10] sm:$0xff]
        %v1027 = vld [vmem:[#allocation4 + $0x18] sm:$0xff]
        %v1028 = vld [vmem:[#allocation4 + $0x20] sm:$0xf]
        %v1029 = vmul.f32 %v1024, %v446
        %v1030 = vmul.f32 %v1025, %v446
        %v1031 = vmul.f32 %v1026, %v446
        %v1032 = vmul.f32 %v1027, %v446
        %v1033 = vmul.f32 %v1028, %v446
        %1034 = vst.msk [vmem:[#allocation5] sm:$0xff] %vm452, %v1029
        %1035 = vst.msk [vmem:[#allocation5 + $0x8] sm:$0xff] %vm452, %v1030
        %1036 = vst.msk [vmem:[#allocation5 + $0x10] sm:$0xff] %vm452, %v1031
        %1037 = vst.msk [vmem:[#allocation5 + $0x18] sm:$0xff] %vm452, %v1032
        %1038 = vst.msk [vmem:[#allocation5 + $0x20] sm:$0xf] %vm309, %v1033
        %v1039 = vld [vmem:[#allocation4] sm:$0xff]
        %v1040 = vld [vmem:[#allocation4 + $0x8] sm:$0xff]
        %v1041 = vld [vmem:[#allocation4 + $0x10] sm:$0xff]
        %v1042 = vld [vmem:[#allocation4 + $0x18] sm:$0xff]
        %v1043 = vld [vmem:[#allocation4 + $0x20] sm:$0xf]
        %v1044 = vmul.f32 %v1039, %v466
        %v1045 = vmul.f32 %v1040, %v466
        %v1046 = vmul.f32 %v1041, %v466
        %v1047 = vmul.f32 %v1042, %v466
        %v1048 = vmul.f32 %v1043, %v466
        %1054 = vrot.lane.b32.xlu0 %v1044, 127
        %v1055 = vpop.permute.xlu0 %1054
        %1056 = vrot.lane.b32.xlu0 %v1045, 127
        %v1057 = vpop.permute.xlu0 %1056
        %1058 = vrot.lane.b32.xlu0 %v1046, 127
        %v1059 = vpop.permute.xlu0 %1058
        %1060 = vrot.lane.b32.xlu0 %v1047, 127
        %v1061 = vpop.permute.xlu0 %1060
        %1062 = vrot.lane.b32.xlu0 %v1048, 127
        %v1063 = vpop.permute.xlu0 %1062
        %1069 = vst.msk [vmem:[#allocation5 + $0x24] sm:$0xff] %vm452, %v1055
        %1070 = vst.msk [vmem:[#allocation5 + $0x2c] sm:$0xff] %vm452, %v1057
        %1071 = vst.msk [vmem:[#allocation5 + $0x34] sm:$0xff] %vm452, %v1059
        %1072 = vst.msk [vmem:[#allocation5 + $0x3c] sm:$0xff] %vm452, %v1061
        %1073 = vst.msk [vmem:[#allocation5 + $0x44] sm:$0xf] %vm309, %v1063
        %v1074 = vld [vmem:[#allocation4] sm:$0xff]
        %v1075 = vld [vmem:[#allocation4 + $0x8] sm:$0xff]
        %v1076 = vld [vmem:[#allocation4 + $0x10] sm:$0xff]
        %v1077 = vld [vmem:[#allocation4 + $0x18] sm:$0xff]
        %v1078 = vld [vmem:[#allocation4 + $0x20] sm:$0xf]
        %v1079 = vmul.f32 %v1074, %v506
        %v1080 = vmul.f32 %v1075, %v506
        %v1081 = vmul.f32 %v1076, %v506
        %v1082 = vmul.f32 %v1077, %v506
        %v1083 = vmul.f32 %v1078, %v506
        %1089 = vrot.lane.b32.xlu0 %v1079, 126
        %v1090 = vpop.permute.xlu0 %1089
        %1091 = vrot.lane.b32.xlu0 %v1080, 126
        %v1092 = vpop.permute.xlu0 %1091
        %1093 = vrot.lane.b32.xlu0 %v1081, 126
        %v1094 = vpop.permute.xlu0 %1093
        %1095 = vrot.lane.b32.xlu0 %v1082, 126
        %v1096 = vpop.permute.xlu0 %1095
        %1097 = vrot.lane.b32.xlu0 %v1083, 126
        %v1098 = vpop.permute.xlu0 %1097
        %1104 = vst.msk [vmem:[#allocation5 + $0x48] sm:$0xff] %vm452, %v1090
        %1105 = vst.msk [vmem:[#allocation5 + $0x50] sm:$0xff] %vm452, %v1092
        %1106 = vst.msk [vmem:[#allocation5 + $0x58] sm:$0xff] %vm452, %v1094
        %1107 = vst.msk [vmem:[#allocation5 + $0x60] sm:$0xff] %vm452, %v1096
        %1108 = vst.msk [vmem:[#allocation5 + $0x68] sm:$0xf] %vm309, %v1098
        %v1109 = vld [vmem:[#allocation4] sm:$0xff]
        %v1110 = vld [vmem:[#allocation4 + $0x8] sm:$0xff]
        %v1111 = vld [vmem:[#allocation4 + $0x10] sm:$0xff]
        %v1112 = vld [vmem:[#allocation4 + $0x18] sm:$0xff]
        %v1113 = vld [vmem:[#allocation4 + $0x20] sm:$0xf]
        %v1114 = vmul.f32 %v1109, %v546
        %v1115 = vmul.f32 %v1110, %v546
        %v1116 = vmul.f32 %v1111, %v546
        %v1117 = vmul.f32 %v1112, %v546
        %v1118 = vmul.f32 %v1113, %v546
        %1124 = vrot.lane.b32.xlu0 %v1114, 120
        %v1125 = vpop.permute.xlu0 %1124
        %1126 = vrot.lane.b32.xlu0 %v1115, 120
        %v1127 = vpop.permute.xlu0 %1126
        %1128 = vrot.lane.b32.xlu0 %v1116, 120
        %v1129 = vpop.permute.xlu0 %1128
        %1130 = vrot.lane.b32.xlu0 %v1117, 120
        %v1131 = vpop.permute.xlu0 %1130
        %1132 = vrot.lane.b32.xlu0 %v1118, 120
        %v1133 = vpop.permute.xlu0 %1132
        %1139 = vst.msk [vmem:[#allocation5 + $0x6c] sm:$0xff] %vm452, %v1125
        %1140 = vst.msk [vmem:[#allocation5 + $0x74] sm:$0xff] %vm452, %v1127
        %1141 = vst.msk [vmem:[#allocation5 + $0x7c] sm:$0xff] %vm452, %v1129
        %1142 = vst.msk [vmem:[#allocation5 + $0x84] sm:$0xff] %vm452, %v1131
        %1143 = vst.msk [vmem:[#allocation5 + $0x8c] sm:$0xf] %vm309, %v1133
        %v1144 = vld [vmem:[#allocation4] sm:$0xff]
        %v1145 = vld [vmem:[#allocation4 + $0x8] sm:$0xff]
        %v1146 = vld [vmem:[#allocation4 + $0x10] sm:$0xff]
        %v1147 = vld [vmem:[#allocation4 + $0x18] sm:$0xff]
        %v1148 = vld [vmem:[#allocation4 + $0x20] sm:$0xf]
        %v1149 = vmul.f32 %v1144, %v586
        %v1150 = vmul.f32 %v1145, %v586
        %v1151 = vmul.f32 %v1146, %v586
        %v1152 = vmul.f32 %v1147, %v586
        %v1153 = vmul.f32 %v1148, %v586
        %1159 = vrot.lane.b32.xlu0 %v1149, 119
        %v1160 = vpop.permute.xlu0 %1159
        %1161 = vrot.lane.b32.xlu0 %v1150, 119
        %v1162 = vpop.permute.xlu0 %1161
        %1163 = vrot.lane.b32.xlu0 %v1151, 119
        %v1164 = vpop.permute.xlu0 %1163
        %1165 = vrot.lane.b32.xlu0 %v1152, 119
        %v1166 = vpop.permute.xlu0 %1165
        %1167 = vrot.lane.b32.xlu0 %v1153, 119
        %v1168 = vpop.permute.xlu0 %1167
        %1174 = vst.msk [vmem:[#allocation5 + $0x90] sm:$0xff] %vm452, %v1160
        %1175 = vst.msk [vmem:[#allocation5 + $0x98] sm:$0xff] %vm452, %v1162
        %1176 = vst.msk [vmem:[#allocation5 + $0xa0] sm:$0xff] %vm452, %v1164
        %1177 = vst.msk [vmem:[#allocation5 + $0xa8] sm:$0xff] %vm452, %v1166
        %1178 = vst.msk [vmem:[#allocation5 + $0xb0] sm:$0xf] %vm309, %v1168
        %v1179 = vld [vmem:[#allocation4] sm:$0xff]
        %v1180 = vld [vmem:[#allocation4 + $0x8] sm:$0xff]
        %v1181 = vld [vmem:[#allocation4 + $0x10] sm:$0xff]
        %v1182 = vld [vmem:[#allocation4 + $0x18] sm:$0xff]
        %v1183 = vld [vmem:[#allocation4 + $0x20] sm:$0xf]
        %v1184 = vmul.f32 %v1179, %v626
        %v1185 = vmul.f32 %v1180, %v626
        %v1186 = vmul.f32 %v1181, %v626
        %v1187 = vmul.f32 %v1182, %v626
        %v1188 = vmul.f32 %v1183, %v626
        %1194 = vrot.lane.b32.xlu0 %v1184, 118
        %v1195 = vpop.permute.xlu0 %1194
        %1196 = vrot.lane.b32.xlu0 %v1185, 118
        %v1197 = vpop.permute.xlu0 %1196
        %1198 = vrot.lane.b32.xlu0 %v1186, 118
        %v1199 = vpop.permute.xlu0 %1198
        %1200 = vrot.lane.b32.xlu0 %v1187, 118
        %v1201 = vpop.permute.xlu0 %1200
        %1202 = vrot.lane.b32.xlu0 %v1188, 118
        %v1203 = vpop.permute.xlu0 %1202
        %1209 = vst.msk [vmem:[#allocation5 + $0xb4] sm:$0xff] %vm452, %v1195
        %1210 = vst.msk [vmem:[#allocation5 + $0xbc] sm:$0xff] %vm452, %v1197
        %1211 = vst.msk [vmem:[#allocation5 + $0xc4] sm:$0xff] %vm452, %v1199
        %1212 = vst.msk [vmem:[#allocation5 + $0xcc] sm:$0xff] %vm452, %v1201
        %1213 = vst.msk [vmem:[#allocation5 + $0xd4] sm:$0xf] %vm309, %v1203
        %v1214 = vld [vmem:[#allocation4] sm:$0xff]
        %v1215 = vld [vmem:[#allocation4 + $0x8] sm:$0xff]
        %v1216 = vld [vmem:[#allocation4 + $0x10] sm:$0xff]
        %v1217 = vld [vmem:[#allocation4 + $0x18] sm:$0xff]
        %v1218 = vld [vmem:[#allocation4 + $0x20] sm:$0xf]
        %v1219 = vmul.f32 %v1214, %v666
        %v1220 = vmul.f32 %v1215, %v666
        %v1221 = vmul.f32 %v1216, %v666
        %v1222 = vmul.f32 %v1217, %v666
        %v1223 = vmul.f32 %v1218, %v666
        %1229 = vrot.lane.b32.xlu0 %v1219, 112
        %v1230 = vpop.permute.xlu0 %1229
        %1231 = vrot.lane.b32.xlu0 %v1220, 112
        %v1232 = vpop.permute.xlu0 %1231
        %1233 = vrot.lane.b32.xlu0 %v1221, 112
        %v1234 = vpop.permute.xlu0 %1233
        %1235 = vrot.lane.b32.xlu0 %v1222, 112
        %v1236 = vpop.permute.xlu0 %1235
        %1237 = vrot.lane.b32.xlu0 %v1223, 112
        %v1238 = vpop.permute.xlu0 %1237
        %1244 = vst.msk [vmem:[#allocation5 + $0xd8] sm:$0xff] %vm452, %v1230
        %1245 = vst.msk [vmem:[#allocation5 + $0xe0] sm:$0xff] %vm452, %v1232
        %1246 = vst.msk [vmem:[#allocation5 + $0xe8] sm:$0xff] %vm452, %v1234
        %1247 = vst.msk [vmem:[#allocation5 + $0xf0] sm:$0xff] %vm452, %v1236
        %1248 = vst.msk [vmem:[#allocation5 + $0xf8] sm:$0xf] %vm309, %v1238
        %v1249 = vld [vmem:[#allocation4] sm:$0xff]
        %v1250 = vld [vmem:[#allocation4 + $0x8] sm:$0xff]
        %v1251 = vld [vmem:[#allocation4 + $0x10] sm:$0xff]
        %v1252 = vld [vmem:[#allocation4 + $0x18] sm:$0xff]
        %v1253 = vld [vmem:[#allocation4 + $0x20] sm:$0xf]
        %v1254 = vmul.f32 %v1249, %v706
        %v1255 = vmul.f32 %v1250, %v706
        %v1256 = vmul.f32 %v1251, %v706
        %v1257 = vmul.f32 %v1252, %v706
        %v1258 = vmul.f32 %v1253, %v706
        %1264 = vrot.lane.b32.xlu0 %v1254, 111
        %v1265 = vpop.permute.xlu0 %1264
        %1266 = vrot.lane.b32.xlu0 %v1255, 111
        %v1267 = vpop.permute.xlu0 %1266
        %1268 = vrot.lane.b32.xlu0 %v1256, 111
        %v1269 = vpop.permute.xlu0 %1268
        %1270 = vrot.lane.b32.xlu0 %v1257, 111
        %v1271 = vpop.permute.xlu0 %1270
        %1272 = vrot.lane.b32.xlu0 %v1258, 111
        %v1273 = vpop.permute.xlu0 %1272
        %1279 = vst.msk [vmem:[#allocation5 + $0xfc] sm:$0xff] %vm452, %v1265
        %1280 = vst.msk [vmem:[#allocation5 + $0x104] sm:$0xff] %vm452, %v1267
        %1281 = vst.msk [vmem:[#allocation5 + $0x10c] sm:$0xff] %vm452, %v1269
        %1282 = vst.msk [vmem:[#allocation5 + $0x114] sm:$0xff] %vm452, %v1271
        %1283 = vst.msk [vmem:[#allocation5 + $0x11c] sm:$0xf] %vm309, %v1273
        %v1284 = vld [vmem:[#allocation4] sm:$0xff]
        %v1285 = vld [vmem:[#allocation4 + $0x8] sm:$0xff]
        %v1286 = vld [vmem:[#allocation4 + $0x10] sm:$0xff]
        %v1287 = vld [vmem:[#allocation4 + $0x18] sm:$0xff]
        %v1288 = vld [vmem:[#allocation4 + $0x20] sm:$0xf]
        %v1289 = vmul.f32 %v1284, %v746
        %v1290 = vmul.f32 %v1285, %v746
        %v1291 = vmul.f32 %v1286, %v746
        %v1292 = vmul.f32 %v1287, %v746
        %v1293 = vmul.f32 %v1288, %v746
        %1299 = vrot.lane.b32.xlu0 %v1289, 110
        %v1300 = vpop.permute.xlu0 %1299
        %1301 = vrot.lane.b32.xlu0 %v1290, 110
        %v1302 = vpop.permute.xlu0 %1301
        %1303 = vrot.lane.b32.xlu0 %v1291, 110
        %v1304 = vpop.permute.xlu0 %1303
        %1305 = vrot.lane.b32.xlu0 %v1292, 110
        %v1306 = vpop.permute.xlu0 %1305
        %1307 = vrot.lane.b32.xlu0 %v1293, 110
        %v1308 = vpop.permute.xlu0 %1307
        %1314 = vst.msk [vmem:[#allocation5 + $0x120] sm:$0xff] %vm452, %v1300
        %1315 = vst.msk [vmem:[#allocation5 + $0x128] sm:$0xff] %vm452, %v1302
        %1316 = vst.msk [vmem:[#allocation5 + $0x130] sm:$0xff] %vm452, %v1304
        %1317 = vst.msk [vmem:[#allocation5 + $0x138] sm:$0xff] %vm452, %v1306
        %1318 = vst.msk [vmem:[#allocation5 + $0x140] sm:$0xf] %vm309, %v1308
        %v1319 = vld [vmem:[#allocation5] sm:$0xff]
        %v1320 = vld [vmem:[#allocation5 + $0x8] sm:$0xff]
        %v1321 = vld [vmem:[#allocation5 + $0x10] sm:$0xff]
        %v1322 = vld [vmem:[#allocation5 + $0x18] sm:$0xff]
        %v1323 = vld [vmem:[#allocation5 + $0x20] sm:$0xff]
        %v1324 = vld [vmem:[#allocation5 + $0x28] sm:$0xff]
        %v1325 = vld [vmem:[#allocation5 + $0x30] sm:$0xff]
        %v1326 = vld [vmem:[#allocation5 + $0x38] sm:$0xff]
        %v1327 = vld [vmem:[#allocation5 + $0x40] sm:$0xff]
        %v1328 = vld [vmem:[#allocation5 + $0x48] sm:$0xff]
        %v1329 = vld [vmem:[#allocation5 + $0x50] sm:$0xff]
        %v1330 = vld [vmem:[#allocation5 + $0x58] sm:$0xff]
        %v1331 = vld [vmem:[#allocation5 + $0x60] sm:$0xff]
        %v1332 = vld [vmem:[#allocation5 + $0x68] sm:$0xff]
        %v1333 = vld [vmem:[#allocation5 + $0x70] sm:$0xff]
        %v1334 = vld [vmem:[#allocation5 + $0x78] sm:$0xff]
        %v1335 = vld [vmem:[#allocation5 + $0x80] sm:$0xff]
        %v1336 = vld [vmem:[#allocation5 + $0x88] sm:$0xff]
        %v1337 = vld [vmem:[#allocation5 + $0x90] sm:$0xff]
        %v1338 = vld [vmem:[#allocation5 + $0x98] sm:$0xff]
        %v1339 = vld [vmem:[#allocation5 + $0xa0] sm:$0xff]
        %v1340 = vld [vmem:[#allocation5 + $0xa8] sm:$0xff]
        %v1341 = vld [vmem:[#allocation5 + $0xb0] sm:$0xff]
        %v1342 = vld [vmem:[#allocation5 + $0xb8] sm:$0xff]
        %v1343 = vld [vmem:[#allocation5 + $0xc0] sm:$0xff]
        %v1344 = vld [vmem:[#allocation5 + $0xc8] sm:$0xff]
        %v1345 = vld [vmem:[#allocation5 + $0xd0] sm:$0xff]
        %v1346 = vld [vmem:[#allocation5 + $0xd8] sm:$0xff]
        %v1347 = vld [vmem:[#allocation5 + $0xe0] sm:$0xff]
        %v1348 = vld [vmem:[#allocation5 + $0xe8] sm:$0xff]
        %v1349 = vld [vmem:[#allocation5 + $0xf0] sm:$0xff]
        %v1350 = vld [vmem:[#allocation5 + $0xf8] sm:$0xff]
        %v1351 = vld [vmem:[#allocation5 + $0x100] sm:$0xff]
        %v1352 = vld [vmem:[#allocation5 + $0x108] sm:$0xff]
        %v1353 = vld [vmem:[#allocation5 + $0x110] sm:$0xff]
        %v1354 = vld [vmem:[#allocation5 + $0x118] sm:$0xff]
        %v1355 = vld [vmem:[#allocation5 + $0x120] sm:$0xff]
        %v1356 = vld [vmem:[#allocation5 + $0x128] sm:$0xff]
        %v1357 = vld [vmem:[#allocation5 + $0x130] sm:$0xff]
        %v1358 = vld [vmem:[#allocation5 + $0x138] sm:$0xff]
        %v1359 = vld [vmem:[#allocation5 + $0x140] sm:$0xf]
        %1361 = vset.pattern.permute.xlu0 0
        %1362 = vperm.xlu0 %1361, %v905
        %v1363 = vpop.permute.xlu0 %1362
        %v1366 = vsel %vm834, %v904, 0
        %v1369 = vsel %vm837, %v1359, 0
        %1371 = vmatpush.msra.mxu0 %v1334
        %1372 = vmatpush.msra.mxu0 %v1333
        %1373 = vmatpush.msra.mxu0 %v1332
        %1374 = vmatpush.msra.mxu0 %v1331
        %1375 = vmatpush.msra.mxu0 %v1330
        %1376 = vmatpush.msra.mxu0 %v1329
        %1377 = vmatpush.msra.mxu0 %v1328
        %1378 = vmatpush.msra.mxu0 %v1327
        %1379 = vmatpush.msra.mxu0 %v1326
        %1380 = vmatpush.msra.mxu0 %v1325
        %1381 = vmatpush.msra.mxu0 %v1324
        %1382 = vmatpush.msra.mxu0 %v1323
        %1383 = vmatpush.msra.mxu0 %v1322
        %1384 = vmatpush.msra.mxu0 %v1321
        %1385 = vmatpush.msra.mxu0 %v1320
        %1386 = vmatpush.msra.mxu0 %v1319
        %1387 = vmatmul.f32.gmra.mxu0 %v902
        %v1388 = vpop.f32.mrf.mxu0
        %v1389 = vadd.f32 %v1363, %v1388
        %1390 = vdwg.mxu0
        %1391 = vmatpush.msra.mxu0 %v1350
        %1392 = vmatpush.msra.mxu0 %v1349
        %1393 = vmatpush.msra.mxu0 %v1348
        %1394 = vmatpush.msra.mxu0 %v1347
        %1395 = vmatpush.msra.mxu0 %v1346
        %1396 = vmatpush.msra.mxu0 %v1345
        %1397 = vmatpush.msra.mxu0 %v1344
        %1398 = vmatpush.msra.mxu0 %v1343
        %1399 = vmatpush.msra.mxu0 %v1342
        %1400 = vmatpush.msra.mxu0 %v1341
        %1401 = vmatpush.msra.mxu0 %v1340
        %1402 = vmatpush.msra.mxu0 %v1339
        %1403 = vmatpush.msra.mxu0 %v1338
        %1404 = vmatpush.msra.mxu0 %v1337
        %1405 = vmatpush.msra.mxu0 %v1336
        %1406 = vmatpush.msra.mxu0 %v1335
        %1407 = vmatmul.f32.gmra.mxu0 %v903
        %v1408 = vpop.f32.mrf.mxu0
        %v1409 = vadd.f32 %v1389, %v1408
        %1410 = vdwg.mxu0
        %1411 = vmatpush.msra.mxu0 0.0
        %1412 = vmatpush.msra.mxu0 0.0
        %1413 = vmatpush.msra.mxu0 0.0
        %1414 = vmatpush.msra.mxu0 0.0
        %1415 = vmatpush.msra.mxu0 0.0
        %1416 = vmatpush.msra.mxu0 0.0
        %1417 = vmatpush.msra.mxu0 0.0
        %1418 = vmatpush.msra.mxu0 %v1369
        %1419 = vmatpush.msra.mxu0 %v1358
        %1420 = vmatpush.msra.mxu0 %v1357
        %1421 = vmatpush.msra.mxu0 %v1356
        %1422 = vmatpush.msra.mxu0 %v1355
        %1423 = vmatpush.msra.mxu0 %v1354
        %1424 = vmatpush.msra.mxu0 %v1353
        %1425 = vmatpush.msra.mxu0 %v1352
        %1426 = vmatpush.msra.mxu0 %v1351
        %1427 = vmatmul.f32.gmra.mxu0 %v1366
        %v1428 = vpop.f32.mrf.mxu0
        %v1429 = vadd.f32 %v1409, %v1428
        %1430 = vdwg.mxu0
        %v1431 = vmax.f32 %v1429, 0.0
        %1432 = vst.msk [vmem:[%s302] sm:$0xff] %vm452, %v1431
        %s1433 = sand.u32 %s163, 1
        %s1434 = scalar_lea.sflag [#allocation8], %s1433
        %s1435 = sand.u32 %s163, 1
        %s1436 = smul.addr %s1435, 8
        %s1437 = scalar_lea.vmem [#allocation12], %s1436
        // Predicated region
        $region57: #{tpu_custom_call.1} parent=43 // pred_check
          %p1438 = pneg %p173
        $region58: #{tpu_custom_call.1} parent=43 // pred_check_branch
          %1440 = sbr.rel (%p1438) target = $region60
        $region59: #{tpu_custom_call.1} parent=43 // pred_region
          %1442 = vsyncadd %s1434, 0
          %s1443 = smul.addr %s24, 8
          %s1444 = scalar_lea.hbm %s6, %s1443
          %s1446 = sshll.u32 %s1437, 4
          %s1447 = int_to_ptr.vmem [resolvable:$true] %s1446
          %s1448 = sshll.u32 %s1444, 4
          %s1449 = int_to_ptr.hbm [resolvable:$true] %s1448
          %1451 = dma.vmem_to_hbm [thread:$0]  %s1447, 128, %s1449, %s1434
        $region60: #{tpu_custom_call.1} parent=43 // pred_fallthru
          _
      $region44: #{tpu_custom_call.1} parent=5 // pred_fallthru
        _
      %p1452 = scmp.le.s32.totalorder 2, %s19
      // Predicated region
      $region61: #{tpu_custom_call.1} parent=5 // pred_check
        %p1453 = pneg %p1452
      $region62: #{tpu_custom_call.1} parent=5 // pred_check_branch
        %1455 = sbr.rel (%p1453) target = $region64
      $region63: #{tpu_custom_call.1} parent=5 // pred_region
        %s1456 = ssub.s32 %s19, 2
        // Predicated region
        $region65: #{tpu_custom_call.1} parent=63 // pred_check
          %p1457 = pneg %p179
        $region66: #{tpu_custom_call.1} parent=63 // pred_check_branch
          %1459 = sbr.rel (%p1457) target = $region68
        $region67: #{tpu_custom_call.1} parent=63 // pred_region
          %s1460 = sand.u32 %s164, 1
          %s1461 = scalar_lea.sflag [#allocation8], %s1460
          %s1462 = sand.u32 %s164, 1
          %s1463 = smul.addr %s1462, 8
          %s1464 = scalar_lea.vmem [#allocation12], %s1463
          %1466 = dma.done %s1461, 128
        $region68: #{tpu_custom_call.1} parent=63 // pred_fallthru
          _
      $region64: #{tpu_custom_call.1} parent=5 // pred_fallthru
        _
    $region6: #{tpu_custom_call.1} parent=1 // loop_footer
      %s23 = sadd.s32 1, %s19
    $region7: #{tpu_custom_call.1} parent=1 // loop_footer_branch
      %18 = sbr.rel target = $region3
    $region8: #{tpu_custom_call.1} parent=1 // loop_exit
      _
    %1467 = vsyncpa [#allocation7], 1
    %s1468 = scalar_lea.sflag [#allocation7], 1
    %1469 = vsyncpa %s1468, 1
    %1470 = vsyncpa [#allocation10], 1
    %1471 = vsyncpa [#allocation8], 1
    %s1472 = scalar_lea.sflag [#allocation8], 1
    %1473 = vsyncpa %s1472, 1

</llo_original>
